<compile_context>
chip_gen: v7x
topology: tpu7x:2x2x1
jax: 0.10.0
libtpu: 0.0.40
codegen_flags: <defaults>
</compile_context>

<pallas_src>
import jax
import jax.numpy as jnp
from jax import lax
from jax.experimental import pallas as pl
from jax.experimental.pallas import tpu as pltpu

# ----------------------------- configuration -------------------------------
B = 2            # batch
S = 8            # memory sequence length (max(memory_len) == S by construction)
SA = 4           # aspect sequence length
D = 32           # embed_dim
P = 3            # polarities_dim
HOPS = 3         # opt.hops
V = 50           # vocab size

BS = B * S       # flattened text rows
BA = B * SA      # flattened aspect rows
NTOK = BS + BA   # total token rows handed to the kernel
VPAD = 128       # vocab padded to a full lane tile (one-hot width)
OUTW = 128       # lane-dense padded output width (sliced back to P outside)
SELW = 32        # lane width of the selection-constant slab
WMATW = 256      # lane width of the packed weight slab


# ------------------------------- Pallas kernel ------------------------------
def memnet_kernel(ids_ref, emb_ref, sel_ref, wmat_ref, vecs_ref, out_ref):
    f32 = jnp.float32

    # ---- fused embedding gather: one-hot(ids) @ embedding table (MXU) ----
    ids = ids_ref[...]                                                # (NTOK, 1) int32
    onehot = (ids == lax.broadcasted_iota(jnp.int32, (NTOK, VPAD), 1)).astype(f32)
    rows = jnp.dot(onehot, emb_ref[...], preferred_element_type=f32)  # (NTOK, D)
    nonpad = (ids != 0).astype(f32)                                   # (NTOK, 1)

    # constant segment-selection / broadcast matrices (see pack_inputs)
    p_s = sel_ref[0:B, 0:BS]                     # (B, BS)  sum text rows per batch
    p_a = sel_ref[0:B, BS:NTOK]                  # (B, BA)  sum aspect rows per batch
    p_st = sel_ref[0:BS, NTOK:NTOK + B]          # (BS, B)  broadcast batch -> text rows
    pos = sel_ref[0:BS, NTOK + B:NTOK + B + 1]   # (BS, 1)  position within each sequence

    # SqueezeEmbedding: zero positions >= memory_len (memory_len = #nonzero ids)
    mem_len = jnp.dot(p_s, nonpad[0:BS, :], preferred_element_type=f32)         # (B, 1)
    mem_mask = (pos < jnp.dot(p_st, mem_len, preferred_element_type=f32)).astype(f32)
    mem2d = rows[0:BS, :] * mem_mask                                            # (BS, D)

    # aspect mean-pool (sum over all aspect tokens / count of nonzero tokens)
    asp_len = jnp.dot(p_a, nonpad[BS:NTOK, :], preferred_element_type=f32)      # (B, 1)
    x = jnp.dot(p_a, rows[BS:NTOK, :], preferred_element_type=f32) / asp_len    # (B, D)

    # ---- packed parameter views (static slices of the two slabs) ----
    wx = wmat_ref[:, 0:D]                        # x_linear weight
    wk = wmat_ref[:, D:2 * D]                    # attention w_k
    wproj = wmat_ref[:, 2 * D:3 * D]             # attention proj
    v_k = wmat_ref[:, 3 * D:3 * D + 1]           # wk @ wattn[0]      (D, 1)
    v_q = wmat_ref[:, 3 * D + 1:3 * D + 2]       # wq @ wattn[1]      (D, 1)
    wd_pad = wmat_ref[:, 128:128 + OUTW]         # dense, zero-padded to 128 lanes
    bx = vecs_ref[0:1, 0:D]
    bk = vecs_ref[1:2, 0:D]
    bproj = vecs_ref[2:3, 0:D]
    bd_pad = vecs_ref[3:4, :]                    # (1, 128), cols >= P are zero
    c = vecs_ref[4:5, 0:1]                       # bk.wattn[0] + bq.wattn[1]

    # ---- hop-invariant attention precompute (weights are shared across hops) ----
    kx = jnp.dot(mem2d, wk, preferred_element_type=f32) + bk                    # (BS, D)
    k_part = jnp.dot(mem2d, v_k, preferred_element_type=f32)                    # (BS, 1)

    for _ in range(HOPS):
        x = jnp.dot(x, wx, preferred_element_type=f32) + bx                     # x_linear
        q_part = jnp.dot(x, v_q, preferred_element_type=f32)                    # (B, 1)
        q_flat = jnp.dot(p_st, q_part, preferred_element_type=f32)              # (BS, 1)
        score = jnp.tanh(k_part + q_flat + c)                                   # in (-1, 1)
        e = jnp.exp(score)                       # bounded -> no max-subtraction needed
        denom = jnp.dot(p_s, e, preferred_element_type=f32)                     # (B, 1)
        num = jnp.dot(p_s, e * kx, preferred_element_type=f32)                  # (B, D)
        out_at = num * pl.reciprocal(denom, approx=True)   # softmax-weighted sum of kx
        out_at = jnp.dot(out_at, wproj, preferred_element_type=f32) + bproj
        x = out_at + x                                                          # residual

    out_ref[...] = jnp.dot(x, wd_pad, preferred_element_type=f32) + bd_pad      # (B, 128)


# ------------------------- wrapper-side constant packing ---------------------
def pack_inputs(emb_matrix, params):
    (wx, bx, wk, bk, wq, bq, wattn, wproj, bproj, wd, bd) = params

    # embedding table padded to a full lane tile of rows
    emb_pad = jnp.zeros((VPAD, D), jnp.float32).at[:V, :].set(emb_matrix)

    # segment-selection constants (depend only on static B/S/SA)
    p_s = (jnp.arange(BS)[None, :] // S == jnp.arange(B)[:, None]).astype(jnp.float32)
    p_a = (jnp.arange(BA)[None, :] // SA == jnp.arange(B)[:, None]).astype(jnp.float32)
    pos = jnp.tile(jnp.arange(S, dtype=jnp.float32), B)
    sel = jnp.zeros((BS, SELW), jnp.float32)
    sel = sel.at[:B, :BS].set(p_s)
    sel = sel.at[:B, BS:NTOK].set(p_a)
    sel = sel.at[:, NTOK:NTOK + B].set(p_s.T)
    sel = sel.at[:, NTOK + B].set(pos)

    # algebraic folds: score = tanh(mem@v_k + x_lin@v_q + c)
    v_k = wk @ wattn[0]
    v_q = wq @ wattn[1]
    c = jnp.dot(bk[0], wattn[0]) + jnp.dot(bq[0], wattn[1])

    wmat = jnp.zeros((D, WMATW), jnp.float32)
    wmat = wmat.at[:, 0:D].set(wx)
    wmat = wmat.at[:, D:2 * D].set(wk)
    wmat = wmat.at[:, 2 * D:3 * D].set(wproj)
    wmat = wmat.at[:, 3 * D].set(v_k)
    wmat = wmat.at[:, 3 * D + 1].set(v_q)
    wmat = wmat.at[:, 128:128 + P].set(wd)       # lane-dense final dense block

    vecs = jnp.zeros((8, 128), jnp.float32)
    vecs = vecs.at[0, :D].set(bx[0])
    vecs = vecs.at[1, :D].set(bk[0])
    vecs = vecs.at[2, :D].set(bproj[0])
    vecs = vecs.at[3, :P].set(bd[0])
    vecs = vecs.at[4, :].set(c)
    return emb_pad, sel, wmat, vecs


@jax.jit
def memnet_pallas(text, aspect_idx, packed):
    emb_pad, sel, wmat, vecs = packed
    ids = jnp.concatenate(
        [text.reshape(-1), aspect_idx.reshape(-1)]).astype(jnp.int32)[:, None]   # (NTOK, 1)

    vmem = pl.BlockSpec(memory_space=pltpu.MemorySpace.VMEM)
    out = pl.pallas_call(
        memnet_kernel,
        out_shape=jax.ShapeDtypeStruct((B, OUTW), jnp.float32),
        in_specs=[vmem] * 5,
        out_specs=vmem,
        compiler_params=pltpu.CompilerParams(vmem_limit_bytes=32 * 1024 * 1024),
    )(ids, emb_pad, sel, wmat, vecs)
    return out[:, :P]


# --------------------------- pure-JAX reference ------------------------------
def memnet_ref(text, aspect_idx, emb_matrix, params):
    (wx, bx, wk, bk, wq, bq, wattn, wproj, bproj, wd, bd) = params
    memory_len = jnp.sum(text != 0, axis=-1)
    aspect_len = jnp.sum(aspect_idx != 0, axis=-1).astype(jnp.float32)

    memory = jnp.take(emb_matrix, text, axis=0)
    mask = (jnp.arange(S)[None, :] < memory_len[:, None]).astype(jnp.float32)
    memory = memory * mask[:, :, None]                   # SqueezeEmbedding zeroing
    aspect_emb = jnp.take(emb_matrix, aspect_idx, axis=0)
    x = jnp.sum(aspect_emb, axis=1) / aspect_len[:, None]

    kx = memory @ wk + bk[0]
    k_part = jnp.sum(kx * wattn[0][None, None, :], axis=-1)
    for _ in range(HOPS):
        x = x @ wx + bx[0]
        qx = x @ wq + bq[0]
        q_part = jnp.sum(qx * wattn[1][None, :], axis=-1, keepdims=True)
        score = jnp.tanh(k_part + q_part)
        attn = jax.nn.softmax(score, axis=-1)
        out_at = jnp.sum(attn[:, :, None] * kx, axis=1)
        out_at = out_at @ wproj + bproj[0]
        x = out_at + x
    return x @ wd + bd[0]


# ------------------------------- main ----------------------------------------
if __name__ == "__main__":
    key = jax.random.PRNGKey(0)
    keys = jax.random.split(key, 16)

    # deterministic "pretrained" embedding matrix, row 0 = padding = zeros
    emb_matrix = 0.1 * jax.random.normal(keys[0], (V, D), dtype=jnp.float32)
    emb_matrix = emb_matrix.at[0].set(0.0)

    def lin(k, fan_in, fan_out):
        return 0.1 * jax.random.normal(k, (fan_in, fan_out), dtype=jnp.float32)

    wx = lin(keys[1], D, D);    bx = 0.01 * jax.random.normal(keys[2], (1, D))
    wk = lin(keys[3], D, D);    bk = 0.01 * jax.random.normal(keys[4], (1, D))
    wq = lin(keys[5], D, D);    bq = 0.01 * jax.random.normal(keys[6], (1, D))
    wattn = 0.1 * jax.random.normal(keys[7], (2, D))     # Attention.weight (2D,) split as (2, D)
    wproj = lin(keys[8], D, D); bproj = 0.01 * jax.random.normal(keys[9], (1, D))
    wd = lin(keys[10], D, P);   bd = 0.01 * jax.random.normal(keys[11], (1, P))
    params = (wx, bx, wk, bk, wq, bq, wattn, wproj, bproj, wd, bd)

    # inputs: context (without aspect) token ids and aspect token ids (0 = pad).
    # sample 0 is full length so that max(memory_len) == S.
    # TODO(synk): SqueezeEmbedding's truncation to the dynamic batch-max length is
    # shape-dynamic; inputs are built with max(memory_len) == S so it is a no-op here.
    text = jax.random.randint(keys[12], (B, S), 1, V).astype(jnp.int32)
    text = text.at[1, 5:].set(0)                         # sample 1 has length 5
    aspect_idx = jax.random.randint(keys[13], (B, SA), 1, V).astype(jnp.int32)
    aspect_idx = aspect_idx.at[1, 2:].set(0)             # sample 1 aspect length 2

    packed = pack_inputs(emb_matrix, params)             # one-time parameter packing

    out = memnet_pallas(text, aspect_idx, packed)
    out = jax.block_until_ready(out)

    # sanity check against pure-JAX reference (tolerance relaxed from 1e-4 because
    # the in-kernel softmax uses the EUP approximate reciprocal)
    ref = memnet_ref(text, aspect_idx, emb_matrix, params)
    assert out.shape == (B, P)
    assert jnp.allclose(out, ref, atol=1e-3, rtol=1e-3), (out, ref)

    print("KERNEL_OK")
</pallas_src>

<mosaic_0001>
module attributes {stable_mosaic.version = 11 : i64} {
  func.func @memnet_kernel(%arg0: memref<24x1xi32, #tpu.memory_space<vmem>>, %arg1: memref<128x32xf32, #tpu.memory_space<vmem>>, %arg2: memref<16x32xf32, #tpu.memory_space<vmem>>, %arg3: memref<32x256xf32, #tpu.memory_space<vmem>>, %arg4: memref<8x128xf32, #tpu.memory_space<vmem>>, %arg5: memref<2x128xf32, #tpu.memory_space<vmem>>) attributes {dimension_semantics = [], scalar_prefetch = 0 : i64, scratch_operands = 0 : i64, tpu.core_type = #tpu.core_type<tc>} {
    %c0 = arith.constant 0 : index
    %c0_0 = arith.constant 0 : index
    %0 = vector.load %arg0[%c0, %c0_0] : memref<24x1xi32, #tpu.memory_space<vmem>>, vector<24x1xi32>
    %1 = tpu.iota {dimensions = array<i32: 1>} : vector<24x128xi32>
    %2 = vector.broadcast %0 : vector<24x1xi32> to vector<24x128xi32>
    %3 = arith.cmpi eq, %2, %1 : vector<24x128xi32>
    %4 = arith.extui %3 : vector<24x128xi1> to vector<24x128xi32>
    %5 = arith.sitofp %4 : vector<24x128xi32> to vector<24x128xf32>
    %c0_1 = arith.constant 0 : index
    %c0_2 = arith.constant 0 : index
    %6 = vector.load %arg1[%c0_1, %c0_2] : memref<128x32xf32, #tpu.memory_space<vmem>>, vector<128x32xf32>
    %cst = arith.constant dense<0.000000e+00> : vector<24x32xf32>
    %7 = tpu.matmul %5, %6, %cst {dimension_numbers = #tpu.dot_dimension_numbers<[1], [0], [0], [1], [0, 0, 1, 1], [], []>} : vector<24x128xf32>, vector<128x32xf32>, vector<24x32xf32> -> vector<24x32xf32>
    %c0_i32 = arith.constant 0 : i32
    %8 = vector.broadcast %c0_i32 : i32 to vector<24x1xi32>
    %9 = arith.cmpi ne, %0, %8 : vector<24x1xi32>
    %10 = arith.extui %9 : vector<24x1xi1> to vector<24x1xi32>
    %11 = arith.sitofp %10 : vector<24x1xi32> to vector<24x1xf32>
    %c0_3 = arith.constant 0 : index
    %c0_4 = arith.constant 0 : index
    %12 = vector.load %arg2[%c0_3, %c0_4] : memref<16x32xf32, #tpu.memory_space<vmem>>, vector<2x16xf32>
    %c0_5 = arith.constant 0 : index
    %c16 = arith.constant 16 : index
    %13 = vector.load %arg2[%c0_5, %c16] : memref<16x32xf32, #tpu.memory_space<vmem>>, vector<2x8xf32>
    %c0_6 = arith.constant 0 : index
    %c24 = arith.constant 24 : index
    %14 = vector.load %arg2[%c0_6, %c24] : memref<16x32xf32, #tpu.memory_space<vmem>>, vector<16x2xf32>
    %c0_7 = arith.constant 0 : index
    %c26 = arith.constant 26 : index
    %15 = vector.load %arg2[%c0_7, %c26] : memref<16x32xf32, #tpu.memory_space<vmem>>, vector<16x1xf32>
    %16 = vector.extract_strided_slice %11 {offsets = [0, 0], sizes = [16, 1], strides = [1, 1]} : vector<24x1xf32> to vector<16x1xf32>
    %cst_8 = arith.constant dense<0.000000e+00> : vector<2x1xf32>
    %17 = tpu.matmul %12, %16, %cst_8 {dimension_numbers = #tpu.dot_dimension_numbers<[1], [0], [0], [1], [0, 0, 1, 1], [], []>} : vector<2x16xf32>, vector<16x1xf32>, vector<2x1xf32> -> vector<2x1xf32>
    %cst_9 = arith.constant dense<0.000000e+00> : vector<16x1xf32>
    %18 = tpu.matmul %14, %17, %cst_9 {dimension_numbers = #tpu.dot_dimension_numbers<[1], [0], [0], [1], [0, 0, 1, 1], [], []>} : vector<16x2xf32>, vector<2x1xf32>, vector<16x1xf32> -> vector<16x1xf32>
    %19 = arith.cmpf olt, %15, %18 : vector<16x1xf32>
    %20 = arith.extui %19 : vector<16x1xi1> to vector<16x1xi32>
    %21 = arith.sitofp %20 : vector<16x1xi32> to vector<16x1xf32>
    %22 = vector.extract_strided_slice %7 {offsets = [0, 0], sizes = [16, 32], strides = [1, 1]} : vector<24x32xf32> to vector<16x32xf32>
    %23 = vector.broadcast %21 : vector<16x1xf32> to vector<16x32xf32>
    %24 = arith.mulf %22, %23 : vector<16x32xf32>
    %25 = vector.extract_strided_slice %11 {offsets = [16, 0], sizes = [8, 1], strides = [1, 1]} : vector<24x1xf32> to vector<8x1xf32>
    %cst_10 = arith.constant dense<0.000000e+00> : vector<2x1xf32>
    %26 = tpu.matmul %13, %25, %cst_10 {dimension_numbers = #tpu.dot_dimension_numbers<[1], [0], [0], [1], [0, 0, 1, 1], [], []>} : vector<2x8xf32>, vector<8x1xf32>, vector<2x1xf32> -> vector<2x1xf32>
    %27 = vector.extract_strided_slice %7 {offsets = [16, 0], sizes = [8, 32], strides = [1, 1]} : vector<24x32xf32> to vector<8x32xf32>
    %cst_11 = arith.constant dense<0.000000e+00> : vector<2x32xf32>
    %28 = tpu.matmul %13, %27, %cst_11 {dimension_numbers = #tpu.dot_dimension_numbers<[1], [0], [0], [1], [0, 0, 1, 1], [], []>} : vector<2x8xf32>, vector<8x32xf32>, vector<2x32xf32> -> vector<2x32xf32>
    %29 = vector.broadcast %26 : vector<2x1xf32> to vector<2x32xf32>
    %30 = arith.divf %28, %29 : vector<2x32xf32>
    %c0_12 = arith.constant 0 : index
    %c0_13 = arith.constant 0 : index
    %31 = vector.load %arg3[%c0_12, %c0_13] : memref<32x256xf32, #tpu.memory_space<vmem>>, vector<32x32xf32>
    %c0_14 = arith.constant 0 : index
    %c32 = arith.constant 32 : index
    %32 = vector.load %arg3[%c0_14, %c32] : memref<32x256xf32, #tpu.memory_space<vmem>>, vector<32x32xf32>
    %c0_15 = arith.constant 0 : index
    %c64 = arith.constant 64 : index
    %33 = vector.load %arg3[%c0_15, %c64] : memref<32x256xf32, #tpu.memory_space<vmem>>, vector<32x32xf32>
    %c0_16 = arith.constant 0 : index
    %c96 = arith.constant 96 : index
    %34 = vector.load %arg3[%c0_16, %c96] : memref<32x256xf32, #tpu.memory_space<vmem>>, vector<32x1xf32>
    %c0_17 = arith.constant 0 : index
    %c97 = arith.constant 97 : index
    %35 = vector.load %arg3[%c0_17, %c97] : memref<32x256xf32, #tpu.memory_space<vmem>>, vector<32x1xf32>
    %c0_18 = arith.constant 0 : index
    %c128 = arith.constant 128 : index
    %36 = vector.load %arg3[%c0_18, %c128] : memref<32x256xf32, #tpu.memory_space<vmem>>, vector<32x128xf32>
    %c0_19 = arith.constant 0 : index
    %c0_20 = arith.constant 0 : index
    %37 = vector.load %arg4[%c0_19, %c0_20] : memref<8x128xf32, #tpu.memory_space<vmem>>, vector<1x32xf32>
    %c1 = arith.constant 1 : index
    %c0_21 = arith.constant 0 : index
    %38 = vector.load %arg4[%c1, %c0_21] : memref<8x128xf32, #tpu.memory_space<vmem>>, vector<1x32xf32>
    %c2 = arith.constant 2 : index
    %c0_22 = arith.constant 0 : index
    %39 = vector.load %arg4[%c2, %c0_22] : memref<8x128xf32, #tpu.memory_space<vmem>>, vector<1x32xf32>
    %c3 = arith.constant 3 : index
    %c0_23 = arith.constant 0 : index
    %40 = vector.load %arg4[%c3, %c0_23] : memref<8x128xf32, #tpu.memory_space<vmem>>, vector<1x128xf32>
    %c4 = arith.constant 4 : index
    %c0_24 = arith.constant 0 : index
    %41 = vector.load %arg4[%c4, %c0_24] : memref<8x128xf32, #tpu.memory_space<vmem>>, vector<1x1xf32>
    %cst_25 = arith.constant dense<0.000000e+00> : vector<16x32xf32>
    %42 = tpu.matmul %24, %32, %cst_25 {dimension_numbers = #tpu.dot_dimension_numbers<[1], [0], [0], [1], [0, 0, 1, 1], [], []>} : vector<16x32xf32>, vector<32x32xf32>, vector<16x32xf32> -> vector<16x32xf32>
    %43 = vector.broadcast %38 : vector<1x32xf32> to vector<16x32xf32>
    %44 = arith.addf %42, %43 : vector<16x32xf32>
    %cst_26 = arith.constant dense<0.000000e+00> : vector<16x1xf32>
    %45 = tpu.matmul %24, %34, %cst_26 {dimension_numbers = #tpu.dot_dimension_numbers<[1], [0], [0], [1], [0, 0, 1, 1], [], []>} : vector<16x32xf32>, vector<32x1xf32>, vector<16x1xf32> -> vector<16x1xf32>
    %cst_27 = arith.constant dense<0.000000e+00> : vector<2x32xf32>
    %46 = tpu.matmul %30, %31, %cst_27 {dimension_numbers = #tpu.dot_dimension_numbers<[1], [0], [0], [1], [0, 0, 1, 1], [], []>} : vector<2x32xf32>, vector<32x32xf32>, vector<2x32xf32> -> vector<2x32xf32>
    %47 = vector.broadcast %37 : vector<1x32xf32> to vector<2x32xf32>
    %48 = arith.addf %46, %47 : vector<2x32xf32>
    %cst_28 = arith.constant dense<0.000000e+00> : vector<2x1xf32>
    %49 = tpu.matmul %48, %35, %cst_28 {dimension_numbers = #tpu.dot_dimension_numbers<[1], [0], [0], [1], [0, 0, 1, 1], [], []>} : vector<2x32xf32>, vector<32x1xf32>, vector<2x1xf32> -> vector<2x1xf32>
    %cst_29 = arith.constant dense<0.000000e+00> : vector<16x1xf32>
    %50 = tpu.matmul %14, %49, %cst_29 {dimension_numbers = #tpu.dot_dimension_numbers<[1], [0], [0], [1], [0, 0, 1, 1], [], []>} : vector<16x2xf32>, vector<2x1xf32>, vector<16x1xf32> -> vector<16x1xf32>
    %51 = arith.addf %45, %50 : vector<16x1xf32>
    %52 = vector.broadcast %41 : vector<1x1xf32> to vector<16x1xf32>
    %53 = arith.addf %51, %52 : vector<16x1xf32>
    %54 = math.tanh %53 : vector<16x1xf32>
    %55 = math.exp %54 : vector<16x1xf32>
    %cst_30 = arith.constant dense<0.000000e+00> : vector<2x1xf32>
    %56 = tpu.matmul %12, %55, %cst_30 {dimension_numbers = #tpu.dot_dimension_numbers<[1], [0], [0], [1], [0, 0, 1, 1], [], []>} : vector<2x16xf32>, vector<16x1xf32>, vector<2x1xf32> -> vector<2x1xf32>
    %57 = vector.broadcast %55 : vector<16x1xf32> to vector<16x32xf32>
    %58 = arith.mulf %57, %44 : vector<16x32xf32>
    %cst_31 = arith.constant dense<0.000000e+00> : vector<2x32xf32>
    %59 = tpu.matmul %12, %58, %cst_31 {dimension_numbers = #tpu.dot_dimension_numbers<[1], [0], [0], [1], [0, 0, 1, 1], [], []>} : vector<2x16xf32>, vector<16x32xf32>, vector<2x32xf32> -> vector<2x32xf32>
    %60 = tpu.reciprocal %56 {approx = true} : vector<2x1xf32> -> vector<2x1xf32>
    %61 = vector.broadcast %60 : vector<2x1xf32> to vector<2x32xf32>
    %62 = arith.mulf %59, %61 : vector<2x32xf32>
    %cst_32 = arith.constant dense<0.000000e+00> : vector<2x32xf32>
    %63 = tpu.matmul %62, %33, %cst_32 {dimension_numbers = #tpu.dot_dimension_numbers<[1], [0], [0], [1], [0, 0, 1, 1], [], []>} : vector<2x32xf32>, vector<32x32xf32>, vector<2x32xf32> -> vector<2x32xf32>
    %64 = vector.broadcast %39 : vector<1x32xf32> to vector<2x32xf32>
    %65 = arith.addf %63, %64 : vector<2x32xf32>
    %66 = arith.addf %65, %48 : vector<2x32xf32>
    %cst_33 = arith.constant dense<0.000000e+00> : vector<2x32xf32>
    %67 = tpu.matmul %66, %31, %cst_33 {dimension_numbers = #tpu.dot_dimension_numbers<[1], [0], [0], [1], [0, 0, 1, 1], [], []>} : vector<2x32xf32>, vector<32x32xf32>, vector<2x32xf32> -> vector<2x32xf32>
    %68 = vector.broadcast %37 : vector<1x32xf32> to vector<2x32xf32>
    %69 = arith.addf %67, %68 : vector<2x32xf32>
    %cst_34 = arith.constant dense<0.000000e+00> : vector<2x1xf32>
    %70 = tpu.matmul %69, %35, %cst_34 {dimension_numbers = #tpu.dot_dimension_numbers<[1], [0], [0], [1], [0, 0, 1, 1], [], []>} : vector<2x32xf32>, vector<32x1xf32>, vector<2x1xf32> -> vector<2x1xf32>
    %cst_35 = arith.constant dense<0.000000e+00> : vector<16x1xf32>
    %71 = tpu.matmul %14, %70, %cst_35 {dimension_numbers = #tpu.dot_dimension_numbers<[1], [0], [0], [1], [0, 0, 1, 1], [], []>} : vector<16x2xf32>, vector<2x1xf32>, vector<16x1xf32> -> vector<16x1xf32>
    %72 = arith.addf %45, %71 : vector<16x1xf32>
    %73 = vector.broadcast %41 : vector<1x1xf32> to vector<16x1xf32>
    %74 = arith.addf %72, %73 : vector<16x1xf32>
    %75 = math.tanh %74 : vector<16x1xf32>
    %76 = math.exp %75 : vector<16x1xf32>
    %cst_36 = arith.constant dense<0.000000e+00> : vector<2x1xf32>
    %77 = tpu.matmul %12, %76, %cst_36 {dimension_numbers = #tpu.dot_dimension_numbers<[1], [0], [0], [1], [0, 0, 1, 1], [], []>} : vector<2x16xf32>, vector<16x1xf32>, vector<2x1xf32> -> vector<2x1xf32>
    %78 = vector.broadcast %76 : vector<16x1xf32> to vector<16x32xf32>
    %79 = arith.mulf %78, %44 : vector<16x32xf32>
    %cst_37 = arith.constant dense<0.000000e+00> : vector<2x32xf32>
    %80 = tpu.matmul %12, %79, %cst_37 {dimension_numbers = #tpu.dot_dimension_numbers<[1], [0], [0], [1], [0, 0, 1, 1], [], []>} : vector<2x16xf32>, vector<16x32xf32>, vector<2x32xf32> -> vector<2x32xf32>
    %81 = tpu.reciprocal %77 {approx = true} : vector<2x1xf32> -> vector<2x1xf32>
    %82 = vector.broadcast %81 : vector<2x1xf32> to vector<2x32xf32>
    %83 = arith.mulf %80, %82 : vector<2x32xf32>
    %cst_38 = arith.constant dense<0.000000e+00> : vector<2x32xf32>
    %84 = tpu.matmul %83, %33, %cst_38 {dimension_numbers = #tpu.dot_dimension_numbers<[1], [0], [0], [1], [0, 0, 1, 1], [], []>} : vector<2x32xf32>, vector<32x32xf32>, vector<2x32xf32> -> vector<2x32xf32>
    %85 = vector.broadcast %39 : vector<1x32xf32> to vector<2x32xf32>
    %86 = arith.addf %84, %85 : vector<2x32xf32>
    %87 = arith.addf %86, %69 : vector<2x32xf32>
    %cst_39 = arith.constant dense<0.000000e+00> : vector<2x32xf32>
    %88 = tpu.matmul %87, %31, %cst_39 {dimension_numbers = #tpu.dot_dimension_numbers<[1], [0], [0], [1], [0, 0, 1, 1], [], []>} : vector<2x32xf32>, vector<32x32xf32>, vector<2x32xf32> -> vector<2x32xf32>
    %89 = vector.broadcast %37 : vector<1x32xf32> to vector<2x32xf32>
    %90 = arith.addf %88, %89 : vector<2x32xf32>
    %cst_40 = arith.constant dense<0.000000e+00> : vector<2x1xf32>
    %91 = tpu.matmul %90, %35, %cst_40 {dimension_numbers = #tpu.dot_dimension_numbers<[1], [0], [0], [1], [0, 0, 1, 1], [], []>} : vector<2x32xf32>, vector<32x1xf32>, vector<2x1xf32> -> vector<2x1xf32>
    %cst_41 = arith.constant dense<0.000000e+00> : vector<16x1xf32>
    %92 = tpu.matmul %14, %91, %cst_41 {dimension_numbers = #tpu.dot_dimension_numbers<[1], [0], [0], [1], [0, 0, 1, 1], [], []>} : vector<16x2xf32>, vector<2x1xf32>, vector<16x1xf32> -> vector<16x1xf32>
    %93 = arith.addf %45, %92 : vector<16x1xf32>
    %94 = vector.broadcast %41 : vector<1x1xf32> to vector<16x1xf32>
    %95 = arith.addf %93, %94 : vector<16x1xf32>
    %96 = math.tanh %95 : vector<16x1xf32>
    %97 = math.exp %96 : vector<16x1xf32>
    %cst_42 = arith.constant dense<0.000000e+00> : vector<2x1xf32>
    %98 = tpu.matmul %12, %97, %cst_42 {dimension_numbers = #tpu.dot_dimension_numbers<[1], [0], [0], [1], [0, 0, 1, 1], [], []>} : vector<2x16xf32>, vector<16x1xf32>, vector<2x1xf32> -> vector<2x1xf32>
    %99 = vector.broadcast %97 : vector<16x1xf32> to vector<16x32xf32>
    %100 = arith.mulf %99, %44 : vector<16x32xf32>
    %cst_43 = arith.constant dense<0.000000e+00> : vector<2x32xf32>
    %101 = tpu.matmul %12, %100, %cst_43 {dimension_numbers = #tpu.dot_dimension_numbers<[1], [0], [0], [1], [0, 0, 1, 1], [], []>} : vector<2x16xf32>, vector<16x32xf32>, vector<2x32xf32> -> vector<2x32xf32>
    %102 = tpu.reciprocal %98 {approx = true} : vector<2x1xf32> -> vector<2x1xf32>
    %103 = vector.broadcast %102 : vector<2x1xf32> to vector<2x32xf32>
    %104 = arith.mulf %101, %103 : vector<2x32xf32>
    %cst_44 = arith.constant dense<0.000000e+00> : vector<2x32xf32>
    %105 = tpu.matmul %104, %33, %cst_44 {dimension_numbers = #tpu.dot_dimension_numbers<[1], [0], [0], [1], [0, 0, 1, 1], [], []>} : vector<2x32xf32>, vector<32x32xf32>, vector<2x32xf32> -> vector<2x32xf32>
    %106 = vector.broadcast %39 : vector<1x32xf32> to vector<2x32xf32>
    %107 = arith.addf %105, %106 : vector<2x32xf32>
    %108 = arith.addf %107, %90 : vector<2x32xf32>
    %cst_45 = arith.constant dense<0.000000e+00> : vector<2x128xf32>
    %109 = tpu.matmul %108, %36, %cst_45 {dimension_numbers = #tpu.dot_dimension_numbers<[1], [0], [0], [1], [0, 0, 1, 1], [], []>} : vector<2x32xf32>, vector<32x128xf32>, vector<2x128xf32> -> vector<2x128xf32>
    %110 = vector.broadcast %40 : vector<1x128xf32> to vector<2x128xf32>
    %111 = arith.addf %109, %110 : vector<2x128xf32>
    %c0_46 = arith.constant 0 : index
    %c0_47 = arith.constant 0 : index
    %112 = vector.load %arg5[%c0_46, %c0_47] : memref<2x128xf32, #tpu.memory_space<vmem>>, vector<2x128xf32>
    tpu.vector_store %arg5[%c0_46, %c0_47], %111 {strides = array<i32>} : memref<2x128xf32, #tpu.memory_space<vmem>>, vector<2x128xf32>,
    return
  }
}

</mosaic_0001>

<llo_original>
// kernel: memnet_pallas.1
$region0: #{memnet_pallas.1}
  #allocation0 [shape = 'u32[]', space=smem, size = 0x4, offset = 0x4, fixed_abs, tag = 'smem constant byte address 0x4 - core index']
  #allocation1 [shape = 'u32[144,128]{1,0:T(1,128)}', space=vmem, size = 0x12000, scoped, tag = 'internal scratch']
  %s0 = inlined_call_operand.vmem [shape: s32[24,1], index: 0, kind: input, shape index: {}]
  %s1 = inlined_call_operand.vmem [shape: f32[128,32], index: 1, kind: input, shape index: {}]
  %s2 = inlined_call_operand.vmem [shape: f32[16,32], index: 2, kind: input, shape index: {}]
  %s3 = inlined_call_operand.vmem [shape: f32[32,256], index: 3, kind: input, shape index: {}]
  %s4 = inlined_call_operand.vmem [shape: f32[8,128], index: 4, kind: input, shape index: {}]
  %s5 = inlined_call_operand.hbm [shape: f32[2,128], index: 5, kind: output, shape index: {}]
  %s6 = sld [smem:[#allocation0]]
  $region30: #{memnet_pallas.1} parent=0
    _
  %s8 = ssub.s32 1, %s6
  %s9 = scalar_select 0, %s8, %s6
  $region1: #{memnet_pallas.1} parent=0
    #allocation2 [shape = 'u8[1024]{0}', space=vmem, size = 0x400, scoped, tag = 'output window, operand 0, single buffered']
    #allocation3 [shape = 's32[1]{0}', space=sflag, size = 0x4, scoped, tag = 'scoped memory for memnet_pallas.1']
    %10 = vsyncpa [#allocation3], 0
    // Predicated region
    $region2: #{memnet_pallas.1} parent=1 // pred_check
      _
    $region3: #{memnet_pallas.1} parent=1 // pred_check_branch
      %12 = sbr.rel (0) target = $region5
    $region4: #{memnet_pallas.1} parent=1 // pred_region
      _
    $region5: #{memnet_pallas.1} parent=1 // pred_fallthru
      _
    // Predicated region
    $region6: #{memnet_pallas.1} parent=1 // pred_check
      _
    $region7: #{memnet_pallas.1} parent=1 // pred_check_branch
      %14 = sbr.rel (0) target = $region9
    $region8: #{memnet_pallas.1} parent=1 // pred_region
      _
    $region9: #{memnet_pallas.1} parent=1 // pred_fallthru
      _
    // Predicated region
    $region10: #{memnet_pallas.1} parent=1 // pred_check
      _
    $region11: #{memnet_pallas.1} parent=1 // pred_check_branch
      %16 = sbr.rel (0) target = $region13
    $region12: #{memnet_pallas.1} parent=1 // pred_region
      _
    $region13: #{memnet_pallas.1} parent=1 // pred_fallthru
      _
    // Predicated region
    $region14: #{memnet_pallas.1} parent=1 // pred_check
      _
    $region15: #{memnet_pallas.1} parent=1 // pred_check_branch
      %18 = sbr.rel (0) target = $region17
    $region16: #{memnet_pallas.1} parent=1 // pred_region
      _
    $region17: #{memnet_pallas.1} parent=1 // pred_fallthru
      _
    // Predicated region
    $region18: #{memnet_pallas.1} parent=1 // pred_check
      _
    $region19: #{memnet_pallas.1} parent=1 // pred_check_branch
      %20 = sbr.rel (0) target = $region21
    $region20: #{memnet_pallas.1} parent=1 // pred_region
      _
    $region21: #{memnet_pallas.1} parent=1 // pred_fallthru
      _
    %v21 = vld [vmem:[%s0] sm:$0xff]
    %v22 = vld [vmem:[%s0 + $0x8] sm:$0xff]
    %v23 = vld [vmem:[%s0 + $0x10] sm:$0xff]
    %v24 = vlaneseq
    %v25 = vand.u32 %v24, 127
    %26 = vset.pattern.permute.xlu0 0
    %27 = vperm.xlu0 %26, %v21
    %v28 = vpop.permute.xlu0 %27
    %29 = vset.pattern.permute.xlu0 0
    %30 = vperm.xlu0 %29, %v22
    %v31 = vpop.permute.xlu0 %30
    %32 = vset.pattern.permute.xlu0 0
    %33 = vperm.xlu0 %32, %v23
    %v34 = vpop.permute.xlu0 %33
    %vm35 = vcmp.eq.s32.totalorder %v28, %v25
    %vm36 = vcmp.eq.s32.totalorder %v31, %v25
    %vm37 = vcmp.eq.s32.totalorder %v34, %v25
    %v38 = vsel %vm35, 1, 0
    %v39 = vsel %vm36, 1, 0
    %v40 = vsel %vm37, 1, 0
    %v41 = vcvt.s32.f32 %v38
    %v42 = vcvt.s32.f32 %v39
    %v43 = vcvt.s32.f32 %v40
    %v44 = vld [vmem:[%s1] sm:$0xff]
    %v45 = vld [vmem:[%s1 + $0x8] sm:$0xff]
    %v46 = vld [vmem:[%s1 + $0x10] sm:$0xff]
    %v47 = vld [vmem:[%s1 + $0x18] sm:$0xff]
    %v48 = vld [vmem:[%s1 + $0x20] sm:$0xff]
    %v49 = vld [vmem:[%s1 + $0x28] sm:$0xff]
    %v50 = vld [vmem:[%s1 + $0x30] sm:$0xff]
    %v51 = vld [vmem:[%s1 + $0x38] sm:$0xff]
    %v52 = vld [vmem:[%s1 + $0x40] sm:$0xff]
    %v53 = vld [vmem:[%s1 + $0x48] sm:$0xff]
    %v54 = vld [vmem:[%s1 + $0x50] sm:$0xff]
    %v55 = vld [vmem:[%s1 + $0x58] sm:$0xff]
    %v56 = vld [vmem:[%s1 + $0x60] sm:$0xff]
    %v57 = vld [vmem:[%s1 + $0x68] sm:$0xff]
    %v58 = vld [vmem:[%s1 + $0x70] sm:$0xff]
    %v59 = vld [vmem:[%s1 + $0x78] sm:$0xff]
    %60 = vmatprep.subr.mxu0 0.0
    %61 = vmatpush1.msra.mxu0 %v44
    %62 = vmatprep.subr.mxu0 0.0
    %63 = vmatpush1.msra.mxu0 %v45
    %64 = vmatprep.subr.mxu0 0.0
    %65 = vmatpush1.msra.mxu0 %v46
    %66 = vmatprep.subr.mxu0 0.0
    %67 = vmatpush1.msra.mxu0 %v47
    %68 = vmatprep.subr.mxu0 0.0
    %69 = vmatpush1.msra.mxu0 %v48
    %70 = vmatprep.subr.mxu0 0.0
    %71 = vmatpush1.msra.mxu0 %v49
    %72 = vmatprep.subr.mxu0 0.0
    %73 = vmatpush1.msra.mxu0 %v50
    %74 = vmatprep.subr.mxu0 0.0
    %75 = vmatpush1.msra.mxu0 %v51
    %76 = vmatprep.subr.mxu0 0.0
    %77 = vmatpush1.msra.mxu0 %v52
    %78 = vmatprep.subr.mxu0 0.0
    %79 = vmatpush1.msra.mxu0 %v53
    %80 = vmatprep.subr.mxu0 0.0
    %81 = vmatpush1.msra.mxu0 %v54
    %82 = vmatprep.subr.mxu0 0.0
    %83 = vmatpush1.msra.mxu0 %v55
    %84 = vmatprep.subr.mxu0 0.0
    %85 = vmatpush1.msra.mxu0 %v56
    %86 = vmatprep.subr.mxu0 0.0
    %87 = vmatpush1.msra.mxu0 %v57
    %88 = vmatprep.subr.mxu0 0.0
    %89 = vmatpush1.msra.mxu0 %v58
    %90 = vmatprep.subr.mxu0 0.0
    %91 = vmatpush1.msra.mxu0 %v59
    %92 = vmatprep.subr.mxu0 0.0
    %93 = vmatpush1.msra.mxu0 0.0
    %94 = vmatprep.subr.mxu0 0.0
    %95 = vmatpush1.msra.mxu0 0.0
    %96 = vmatprep.subr.mxu0 0.0
    %97 = vmatpush1.msra.mxu0 0.0
    %98 = vmatprep.subr.mxu0 0.0
    %99 = vmatpush1.msra.mxu0 0.0
    %100 = vmatprep.subr.mxu0 0.0
    %101 = vmatpush1.msra.mxu0 0.0
    %102 = vmatprep.subr.mxu0 0.0
    %103 = vmatpush1.msra.mxu0 0.0
    %104 = vmatprep.subr.mxu0 0.0
    %105 = vmatpush1.msra.mxu0 0.0
    %106 = vmatprep.subr.mxu0 0.0
    %107 = vmatpush1.msra.mxu0 0.0
    %108 = vmatprep.subr.mxu0 0.0
    %109 = vmatpush1.msra.mxu0 0.0
    %110 = vmatprep.subr.mxu0 0.0
    %111 = vmatpush1.msra.mxu0 0.0
    %112 = vmatprep.subr.mxu0 0.0
    %113 = vmatpush1.msra.mxu0 0.0
    %114 = vmatprep.subr.mxu0 0.0
    %115 = vmatpush1.msra.mxu0 0.0
    %116 = vmatprep.subr.mxu0 0.0
    %117 = vmatpush1.msra.mxu0 0.0
    %118 = vmatprep.subr.mxu0 0.0
    %119 = vmatpush1.msra.mxu0 0.0
    %120 = vmatprep.subr.mxu0 0.0
    %121 = vmatpush1.msra.mxu0 0.0
    %122 = vmatprep.subr.mxu0 0.0
    %123 = vmatpush1.msra.mxu0 0.0
    %124 = vmatprep.mubr.f32.mxu0 0.0
    %125 = vmatmul.mubr.f32.gmra.mrb[0].mxu0 %v41
    %v126 = vpop.f32.mrb[0].mxu0
    %v127 = vadd.f32 0.0, %v126
    %v128 = vpop.f32.mrb[0].mxu0
    %129 = vmatprep.mubr.f32.mxu0 0.0
    %130 = vmatmul.mubr.f32.gmra.mrb[0].mxu0 %v42
    %v131 = vpop.f32.mrb[0].mxu0
    %v132 = vadd.f32 0.0, %v131
    %v133 = vpop.f32.mrb[0].mxu0
    %134 = vmatprep.mubr.f32.mxu0 0.0
    %135 = vmatmul.mubr.f32.gmra.mrb[0].mxu0 %v43
    %v136 = vpop.f32.mrb[0].mxu0
    %v137 = vadd.f32 0.0, %v136
    %v138 = vpop.f32.mrb[0].mxu0
    %139 = vdwg.mxu0
    %vm140 = vcmp.ne.s32.totalorder %v21, 0
    %vm141 = vcmp.ne.s32.totalorder %v22, 0
    %vm142 = vcmp.ne.s32.totalorder %v23, 0
    %v143 = vsel %vm140, 1, 0
    %v144 = vsel %vm141, 1, 0
    %v145 = vsel %vm142, 1, 0
    %v146 = vcvt.s32.f32 %v143
    %v147 = vcvt.s32.f32 %v144
    %v148 = vcvt.s32.f32 %v145
    %v149 = vld [vmem:[%s2] sm:$0x3]
    %v150 = vld [vmem:[%s2] sm:$0xff]
    %v151 = vld [vmem:[%s2 + $0x8] sm:$0xff]
    %vm152 = vcmask 130048
    %v154 = vsel %vm152, %v149, 0
    %156 = vmatprep.subr.mxu0 0.0
    %157 = vmatpush1.msra.mxu0 %v146
    %158 = vmatprep.subr.mxu0 0.0
    %159 = vmatpush1.msra.mxu0 %v147
    %160 = vmatprep.subr.mxu0 0.0
    %161 = vmatpush1.msra.mxu0 0.0
    %162 = vmatprep.subr.mxu0 0.0
    %163 = vmatpush1.msra.mxu0 0.0
    %164 = vmatprep.subr.mxu0 0.0
    %165 = vmatpush1.msra.mxu0 0.0
    %166 = vmatprep.subr.mxu0 0.0
    %167 = vmatpush1.msra.mxu0 0.0
    %168 = vmatprep.subr.mxu0 0.0
    %169 = vmatpush1.msra.mxu0 0.0
    %170 = vmatprep.subr.mxu0 0.0
    %171 = vmatpush1.msra.mxu0 0.0
    %172 = vmatprep.subr.mxu0 0.0
    %173 = vmatpush1.msra.mxu0 0.0
    %174 = vmatprep.subr.mxu0 0.0
    %175 = vmatpush1.msra.mxu0 0.0
    %176 = vmatprep.subr.mxu0 0.0
    %177 = vmatpush1.msra.mxu0 0.0
    %178 = vmatprep.subr.mxu0 0.0
    %179 = vmatpush1.msra.mxu0 0.0
    %180 = vmatprep.subr.mxu0 0.0
    %181 = vmatpush1.msra.mxu0 0.0
    %182 = vmatprep.subr.mxu0 0.0
    %183 = vmatpush1.msra.mxu0 0.0
    %184 = vmatprep.subr.mxu0 0.0
    %185 = vmatpush1.msra.mxu0 0.0
    %186 = vmatprep.subr.mxu0 0.0
    %187 = vmatpush1.msra.mxu0 0.0
    %188 = vmatprep.subr.mxu0 0.0
    %189 = vmatpush1.msra.mxu0 0.0
    %190 = vmatprep.subr.mxu0 0.0
    %191 = vmatpush1.msra.mxu0 0.0
    %192 = vmatprep.subr.mxu0 0.0
    %193 = vmatpush1.msra.mxu0 0.0
    %194 = vmatprep.subr.mxu0 0.0
    %195 = vmatpush1.msra.mxu0 0.0
    %196 = vmatprep.subr.mxu0 0.0
    %197 = vmatpush1.msra.mxu0 0.0
    %198 = vmatprep.subr.mxu0 0.0
    %199 = vmatpush1.msra.mxu0 0.0
    %200 = vmatprep.subr.mxu0 0.0
    %201 = vmatpush1.msra.mxu0 0.0
    %202 = vmatprep.subr.mxu0 0.0
    %203 = vmatpush1.msra.mxu0 0.0
    %204 = vmatprep.subr.mxu0 0.0
    %205 = vmatpush1.msra.mxu0 0.0
    %206 = vmatprep.subr.mxu0 0.0
    %207 = vmatpush1.msra.mxu0 0.0
    %208 = vmatprep.subr.mxu0 0.0
    %209 = vmatpush1.msra.mxu0 0.0
    %210 = vmatprep.subr.mxu0 0.0
    %211 = vmatpush1.msra.mxu0 0.0
    %212 = vmatprep.subr.mxu0 0.0
    %213 = vmatpush1.msra.mxu0 0.0
    %214 = vmatprep.subr.mxu0 0.0
    %215 = vmatpush1.msra.mxu0 0.0
    %216 = vmatprep.subr.mxu0 0.0
    %217 = vmatpush1.msra.mxu0 0.0
    %218 = vmatprep.subr.mxu0 0.0
    %219 = vmatpush1.msra.mxu0 0.0
    %220 = vmatprep.mubr.f32.mxu0 0.0
    %221 = vmatmul.mubr.f32.gmra.mrb[0].mxu0 %v154
    %v222 = vpop.f32.mrb[0].mxu0
    %v223 = vadd.f32 0.0, %v222
    %v224 = vpop.f32.mrb[0].mxu0
    %225 = vdwg.mxu0
    %228 = vrot.lane.b32.xlu0 %v150, 104
    %v229 = vpop.permute.xlu0 %228
    %230 = vrot.lane.b32.xlu0 %v151, 104
    %v231 = vpop.permute.xlu0 %230
    %vm232 = vcmask 15360
    %v233 = vsel %vm232, %v229, 0
    %v235 = vsel %vm232, %v231, 0
    %vm237 = vcmask 1041408
    %v239 = vsel %vm237, %v223, 0
    %241 = vmatprep.subr.mxu0 0.0
    %242 = vmatpush1.msra.mxu0 %v239
    %243 = vmatprep.subr.mxu0 0.0
    %244 = vmatpush1.msra.mxu0 0.0
    %245 = vmatprep.subr.mxu0 0.0
    %246 = vmatpush1.msra.mxu0 0.0
    %247 = vmatprep.subr.mxu0 0.0
    %248 = vmatpush1.msra.mxu0 0.0
    %249 = vmatprep.subr.mxu0 0.0
    %250 = vmatpush1.msra.mxu0 0.0
    %251 = vmatprep.subr.mxu0 0.0
    %252 = vmatpush1.msra.mxu0 0.0
    %253 = vmatprep.subr.mxu0 0.0
    %254 = vmatpush1.msra.mxu0 0.0
    %255 = vmatprep.subr.mxu0 0.0
    %256 = vmatpush1.msra.mxu0 0.0
    %257 = vmatprep.subr.mxu0 0.0
    %258 = vmatpush1.msra.mxu0 0.0
    %259 = vmatprep.subr.mxu0 0.0
    %260 = vmatpush1.msra.mxu0 0.0
    %261 = vmatprep.subr.mxu0 0.0
    %262 = vmatpush1.msra.mxu0 0.0
    %263 = vmatprep.subr.mxu0 0.0
    %264 = vmatpush1.msra.mxu0 0.0
    %265 = vmatprep.subr.mxu0 0.0
    %266 = vmatpush1.msra.mxu0 0.0
    %267 = vmatprep.subr.mxu0 0.0
    %268 = vmatpush1.msra.mxu0 0.0
    %269 = vmatprep.subr.mxu0 0.0
    %270 = vmatpush1.msra.mxu0 0.0
    %271 = vmatprep.subr.mxu0 0.0
    %272 = vmatpush1.msra.mxu0 0.0
    %273 = vmatprep.subr.mxu0 0.0
    %274 = vmatpush1.msra.mxu0 0.0
    %275 = vmatprep.subr.mxu0 0.0
    %276 = vmatpush1.msra.mxu0 0.0
    %277 = vmatprep.subr.mxu0 0.0
    %278 = vmatpush1.msra.mxu0 0.0
    %279 = vmatprep.subr.mxu0 0.0
    %280 = vmatpush1.msra.mxu0 0.0
    %281 = vmatprep.subr.mxu0 0.0
    %282 = vmatpush1.msra.mxu0 0.0
    %283 = vmatprep.subr.mxu0 0.0
    %284 = vmatpush1.msra.mxu0 0.0
    %285 = vmatprep.subr.mxu0 0.0
    %286 = vmatpush1.msra.mxu0 0.0
    %287 = vmatprep.subr.mxu0 0.0
    %288 = vmatpush1.msra.mxu0 0.0
    %289 = vmatprep.subr.mxu0 0.0
    %290 = vmatpush1.msra.mxu0 0.0
    %291 = vmatprep.subr.mxu0 0.0
    %292 = vmatpush1.msra.mxu0 0.0
    %293 = vmatprep.subr.mxu0 0.0
    %294 = vmatpush1.msra.mxu0 0.0
    %295 = vmatprep.subr.mxu0 0.0
    %296 = vmatpush1.msra.mxu0 0.0
    %297 = vmatprep.subr.mxu0 0.0
    %298 = vmatpush1.msra.mxu0 0.0
    %299 = vmatprep.subr.mxu0 0.0
    %300 = vmatpush1.msra.mxu0 0.0
    %301 = vmatprep.subr.mxu0 0.0
    %302 = vmatpush1.msra.mxu0 0.0
    %303 = vmatprep.subr.mxu0 0.0
    %304 = vmatpush1.msra.mxu0 0.0
    %305 = vmatprep.mubr.f32.mxu0 0.0
    %306 = vmatmul.mubr.f32.gmra.mrb[0].mxu0 %v233
    %v307 = vpop.f32.mrb[0].mxu0
    %v308 = vadd.f32 0.0, %v307
    %v309 = vpop.f32.mrb[0].mxu0
    %310 = vmatprep.mubr.f32.mxu0 0.0
    %311 = vmatmul.mubr.f32.gmra.mrb[0].mxu0 %v235
    %v312 = vpop.f32.mrb[0].mxu0
    %v313 = vadd.f32 0.0, %v312
    %v314 = vpop.f32.mrb[0].mxu0
    %315 = vdwg.mxu0
    %318 = vrot.lane.b32.xlu0 %v308, 26
    %v319 = vpop.permute.xlu0 %318
    %320 = vrot.lane.b32.xlu0 %v313, 26
    %v321 = vpop.permute.xlu0 %320
    %vm324 = vcmp.lt.f32.partialorder %v150, %v319
    %vm325 = vcmp.lt.f32.partialorder %v151, %v321
    %v326 = vsel %vm324, 1, 0
    %v327 = vsel %vm325, 1, 0
    %v328 = vcvt.s32.f32 %v326
    %v329 = vcvt.s32.f32 %v327
    %331 = vset.pattern.permute.xlu0 26
    %332 = vperm.xlu0 %331, %v328
    %v333 = vpop.permute.xlu0 %332
    %336 = vset.pattern.permute.xlu0 26
    %337 = vperm.xlu0 %336, %v329
    %v338 = vpop.permute.xlu0 %337
    %v340 = vmul.f32 %v127, %v333
    %v341 = vmul.f32 %v132, %v338
    %342 = vrot.lane.b32.xlu0 %v149, 112
    %v343 = vpop.permute.xlu0 %342
    %vm344 = vcmask 64512
    %v345 = vsel %vm344, %v343, 0
    %347 = vmatprep.subr.mxu0 0.0
    %348 = vmatpush1.msra.mxu0 %v148
    %349 = vmatprep.subr.mxu0 0.0
    %350 = vmatpush1.msra.mxu0 0.0
    %351 = vmatprep.subr.mxu0 0.0
    %352 = vmatpush1.msra.mxu0 0.0
    %353 = vmatprep.subr.mxu0 0.0
    %354 = vmatpush1.msra.mxu0 0.0
    %355 = vmatprep.subr.mxu0 0.0
    %356 = vmatpush1.msra.mxu0 0.0
    %357 = vmatprep.subr.mxu0 0.0
    %358 = vmatpush1.msra.mxu0 0.0
    %359 = vmatprep.subr.mxu0 0.0
    %360 = vmatpush1.msra.mxu0 0.0
    %361 = vmatprep.subr.mxu0 0.0
    %362 = vmatpush1.msra.mxu0 0.0
    %363 = vmatprep.subr.mxu0 0.0
    %364 = vmatpush1.msra.mxu0 0.0
    %365 = vmatprep.subr.mxu0 0.0
    %366 = vmatpush1.msra.mxu0 0.0
    %367 = vmatprep.subr.mxu0 0.0
    %368 = vmatpush1.msra.mxu0 0.0
    %369 = vmatprep.subr.mxu0 0.0
    %370 = vmatpush1.msra.mxu0 0.0
    %371 = vmatprep.subr.mxu0 0.0
    %372 = vmatpush1.msra.mxu0 0.0
    %373 = vmatprep.subr.mxu0 0.0
    %374 = vmatpush1.msra.mxu0 0.0
    %375 = vmatprep.subr.mxu0 0.0
    %376 = vmatpush1.msra.mxu0 0.0
    %377 = vmatprep.subr.mxu0 0.0
    %378 = vmatpush1.msra.mxu0 0.0
    %379 = vmatprep.subr.mxu0 0.0
    %380 = vmatpush1.msra.mxu0 0.0
    %381 = vmatprep.subr.mxu0 0.0
    %382 = vmatpush1.msra.mxu0 0.0
    %383 = vmatprep.subr.mxu0 0.0
    %384 = vmatpush1.msra.mxu0 0.0
    %385 = vmatprep.subr.mxu0 0.0
    %386 = vmatpush1.msra.mxu0 0.0
    %387 = vmatprep.subr.mxu0 0.0
    %388 = vmatpush1.msra.mxu0 0.0
    %389 = vmatprep.subr.mxu0 0.0
    %390 = vmatpush1.msra.mxu0 0.0
    %391 = vmatprep.subr.mxu0 0.0
    %392 = vmatpush1.msra.mxu0 0.0
    %393 = vmatprep.subr.mxu0 0.0
    %394 = vmatpush1.msra.mxu0 0.0
    %395 = vmatprep.subr.mxu0 0.0
    %396 = vmatpush1.msra.mxu0 0.0
    %397 = vmatprep.subr.mxu0 0.0
    %398 = vmatpush1.msra.mxu0 0.0
    %399 = vmatprep.subr.mxu0 0.0
    %400 = vmatpush1.msra.mxu0 0.0
    %401 = vmatprep.subr.mxu0 0.0
    %402 = vmatpush1.msra.mxu0 0.0
    %403 = vmatprep.subr.mxu0 0.0
    %404 = vmatpush1.msra.mxu0 0.0
    %405 = vmatprep.subr.mxu0 0.0
    %406 = vmatpush1.msra.mxu0 0.0
    %407 = vmatprep.subr.mxu0 0.0
    %408 = vmatpush1.msra.mxu0 0.0
    %409 = vmatprep.subr.mxu0 0.0
    %410 = vmatpush1.msra.mxu0 0.0
    %411 = vmatprep.mubr.f32.mxu0 0.0
    %412 = vmatmul.mubr.f32.gmra.mrb[0].mxu0 %v345
    %v413 = vpop.f32.mrb[0].mxu0
    %v414 = vadd.f32 0.0, %v413
    %v415 = vpop.f32.mrb[0].mxu0
    %416 = vdwg.mxu0
    %417 = vmatprep.subr.mxu0 0.0
    %418 = vmatpush1.msra.mxu0 %v137
    %419 = vmatprep.subr.mxu0 0.0
    %420 = vmatpush1.msra.mxu0 0.0
    %421 = vmatprep.subr.mxu0 0.0
    %422 = vmatpush1.msra.mxu0 0.0
    %423 = vmatprep.subr.mxu0 0.0
    %424 = vmatpush1.msra.mxu0 0.0
    %425 = vmatprep.subr.mxu0 0.0
    %426 = vmatpush1.msra.mxu0 0.0
    %427 = vmatprep.subr.mxu0 0.0
    %428 = vmatpush1.msra.mxu0 0.0
    %429 = vmatprep.subr.mxu0 0.0
    %430 = vmatpush1.msra.mxu0 0.0
    %431 = vmatprep.subr.mxu0 0.0
    %432 = vmatpush1.msra.mxu0 0.0
    %433 = vmatprep.subr.mxu0 0.0
    %434 = vmatpush1.msra.mxu0 0.0
    %435 = vmatprep.subr.mxu0 0.0
    %436 = vmatpush1.msra.mxu0 0.0
    %437 = vmatprep.subr.mxu0 0.0
    %438 = vmatpush1.msra.mxu0 0.0
    %439 = vmatprep.subr.mxu0 0.0
    %440 = vmatpush1.msra.mxu0 0.0
    %441 = vmatprep.subr.mxu0 0.0
    %442 = vmatpush1.msra.mxu0 0.0
    %443 = vmatprep.subr.mxu0 0.0
    %444 = vmatpush1.msra.mxu0 0.0
    %445 = vmatprep.subr.mxu0 0.0
    %446 = vmatpush1.msra.mxu0 0.0
    %447 = vmatprep.subr.mxu0 0.0
    %448 = vmatpush1.msra.mxu0 0.0
    %449 = vmatprep.subr.mxu0 0.0
    %450 = vmatpush1.msra.mxu0 0.0
    %451 = vmatprep.subr.mxu0 0.0
    %452 = vmatpush1.msra.mxu0 0.0
    %453 = vmatprep.subr.mxu0 0.0
    %454 = vmatpush1.msra.mxu0 0.0
    %455 = vmatprep.subr.mxu0 0.0
    %456 = vmatpush1.msra.mxu0 0.0
    %457 = vmatprep.subr.mxu0 0.0
    %458 = vmatpush1.msra.mxu0 0.0
    %459 = vmatprep.subr.mxu0 0.0
    %460 = vmatpush1.msra.mxu0 0.0
    %461 = vmatprep.subr.mxu0 0.0
    %462 = vmatpush1.msra.mxu0 0.0
    %463 = vmatprep.subr.mxu0 0.0
    %464 = vmatpush1.msra.mxu0 0.0
    %465 = vmatprep.subr.mxu0 0.0
    %466 = vmatpush1.msra.mxu0 0.0
    %467 = vmatprep.subr.mxu0 0.0
    %468 = vmatpush1.msra.mxu0 0.0
    %469 = vmatprep.subr.mxu0 0.0
    %470 = vmatpush1.msra.mxu0 0.0
    %471 = vmatprep.subr.mxu0 0.0
    %472 = vmatpush1.msra.mxu0 0.0
    %473 = vmatprep.subr.mxu0 0.0
    %474 = vmatpush1.msra.mxu0 0.0
    %475 = vmatprep.subr.mxu0 0.0
    %476 = vmatpush1.msra.mxu0 0.0
    %477 = vmatprep.subr.mxu0 0.0
    %478 = vmatpush1.msra.mxu0 0.0
    %479 = vmatprep.subr.mxu0 0.0
    %480 = vmatpush1.msra.mxu0 0.0
    %481 = vmatprep.mubr.f32.mxu0 0.0
    %482 = vmatmul.mubr.f32.gmra.mrb[0].mxu0 %v345
    %v483 = vpop.f32.mrb[0].mxu0
    %v484 = vadd.f32 0.0, %v483
    %v485 = vpop.f32.mrb[0].mxu0
    %486 = vdwg.mxu0
    %488 = vset.pattern.permute.xlu0 0
    %489 = vperm.xlu0 %488, %v414
    %v490 = vpop.permute.xlu0 %489
    %v492 = vrcp.pop %v490
    %v493 = vmul.f32 %v484, %v492
    %v494 = vld [vmem:[%s3] sm:$0xff]
    %v495 = vld [vmem:[%s3 + $0x10] sm:$0xff]
    %v496 = vld [vmem:[%s3 + $0x20] sm:$0xff]
    %v497 = vld [vmem:[%s3 + $0x30] sm:$0xff]
    %v498 = vld [vmem:[%s3 + $0x8] sm:$0xff]
    %v499 = vld [vmem:[%s3 + $0x18] sm:$0xff]
    %v500 = vld [vmem:[%s3 + $0x28] sm:$0xff]
    %v501 = vld [vmem:[%s3 + $0x38] sm:$0xff]
    %v502 = vld [vmem:[%s4] sm:$0x1]
    %v503 = vld [vmem:[%s4 + $0x1] sm:$0x1]
    %v504 = vld [vmem:[%s4 + $0x2] sm:$0x1]
    %v505 = vld [vmem:[%s4 + $0x3] sm:$0x1]
    %v506 = vld [vmem:[%s4 + $0x4] sm:$0x1]
    %v507 = vlaneseq
    %v508 = vshrl.u32 %v507, 7
    %v509 = vsub.s32 0, %v508
    %v510 = vrot.slane %v503, %v509
    %515 = vrot.lane.b32.xlu0 %v494, 96
    %v516 = vpop.permute.xlu0 %515
    %517 = vrot.lane.b32.xlu0 %v495, 96
    %v518 = vpop.permute.xlu0 %517
    %519 = vrot.lane.b32.xlu0 %v496, 96
    %v520 = vpop.permute.xlu0 %519
    %521 = vrot.lane.b32.xlu0 %v497, 96
    %v522 = vpop.permute.xlu0 %521
    %vm527 = vcmask 261120
    %v529 = vsel %vm527, %v340, 0
    %v532 = vsel %vm527, %v341, 0
    %534 = vmatprep.subr.mxu0 0.0
    %535 = vmatpush1.msra.mxu0 %v516
    %536 = vmatprep.subr.mxu0 0.0
    %537 = vmatpush1.msra.mxu0 %v518
    %538 = vmatprep.subr.mxu0 0.0
    %539 = vmatpush1.msra.mxu0 %v520
    %540 = vmatprep.subr.mxu0 0.0
    %541 = vmatpush1.msra.mxu0 %v522
    %542 = vmatprep.subr.mxu0 0.0
    %543 = vmatpush1.msra.mxu0 0.0
    %544 = vmatprep.subr.mxu0 0.0
    %545 = vmatpush1.msra.mxu0 0.0
    %546 = vmatprep.subr.mxu0 0.0
    %547 = vmatpush1.msra.mxu0 0.0
    %548 = vmatprep.subr.mxu0 0.0
    %549 = vmatpush1.msra.mxu0 0.0
    %550 = vmatprep.subr.mxu0 0.0
    %551 = vmatpush1.msra.mxu0 0.0
    %552 = vmatprep.subr.mxu0 0.0
    %553 = vmatpush1.msra.mxu0 0.0
    %554 = vmatprep.subr.mxu0 0.0
    %555 = vmatpush1.msra.mxu0 0.0
    %556 = vmatprep.subr.mxu0 0.0
    %557 = vmatpush1.msra.mxu0 0.0
    %558 = vmatprep.subr.mxu0 0.0
    %559 = vmatpush1.msra.mxu0 0.0
    %560 = vmatprep.subr.mxu0 0.0
    %561 = vmatpush1.msra.mxu0 0.0
    %562 = vmatprep.subr.mxu0 0.0
    %563 = vmatpush1.msra.mxu0 0.0
    %564 = vmatprep.subr.mxu0 0.0
    %565 = vmatpush1.msra.mxu0 0.0
    %566 = vmatprep.subr.mxu0 0.0
    %567 = vmatpush1.msra.mxu0 0.0
    %568 = vmatprep.subr.mxu0 0.0
    %569 = vmatpush1.msra.mxu0 0.0
    %570 = vmatprep.subr.mxu0 0.0
    %571 = vmatpush1.msra.mxu0 0.0
    %572 = vmatprep.subr.mxu0 0.0
    %573 = vmatpush1.msra.mxu0 0.0
    %574 = vmatprep.subr.mxu0 0.0
    %575 = vmatpush1.msra.mxu0 0.0
    %576 = vmatprep.subr.mxu0 0.0
    %577 = vmatpush1.msra.mxu0 0.0
    %578 = vmatprep.subr.mxu0 0.0
    %579 = vmatpush1.msra.mxu0 0.0
    %580 = vmatprep.subr.mxu0 0.0
    %581 = vmatpush1.msra.mxu0 0.0
    %582 = vmatprep.subr.mxu0 0.0
    %583 = vmatpush1.msra.mxu0 0.0
    %584 = vmatprep.subr.mxu0 0.0
    %585 = vmatpush1.msra.mxu0 0.0
    %586 = vmatprep.subr.mxu0 0.0
    %587 = vmatpush1.msra.mxu0 0.0
    %588 = vmatprep.subr.mxu0 0.0
    %589 = vmatpush1.msra.mxu0 0.0
    %590 = vmatprep.subr.mxu0 0.0
    %591 = vmatpush1.msra.mxu0 0.0
    %592 = vmatprep.subr.mxu0 0.0
    %593 = vmatpush1.msra.mxu0 0.0
    %594 = vmatprep.subr.mxu0 0.0
    %595 = vmatpush1.msra.mxu0 0.0
    %596 = vmatprep.subr.mxu0 0.0
    %597 = vmatpush1.msra.mxu0 0.0
    %598 = vmatprep.mubr.f32.mxu0 0.0
    %599 = vmatmul.mubr.f32.gmra.mrb[0].mxu0 %v529
    %v600 = vpop.f32.mrb[0].mxu0
    %v601 = vadd.f32 %v510, %v600
    %v602 = vpop.f32.mrb[0].mxu0
    %603 = vmatprep.mubr.f32.mxu0 0.0
    %604 = vmatmul.mubr.f32.gmra.mrb[0].mxu0 %v532
    %v605 = vpop.f32.mrb[0].mxu0
    %v606 = vadd.f32 %v510, %v605
    %v607 = vpop.f32.mrb[0].mxu0
    %608 = vdwg.mxu0
    %609 = vrot.lane.b32.xlu0 %v494, 32
    %v610 = vpop.permute.xlu0 %609
    %611 = vrot.lane.b32.xlu0 %v495, 32
    %v612 = vpop.permute.xlu0 %611
    %613 = vrot.lane.b32.xlu0 %v496, 32
    %v614 = vpop.permute.xlu0 %613
    %615 = vrot.lane.b32.xlu0 %v497, 32
    %v616 = vpop.permute.xlu0 %615
    %621 = vmatprep.subr.mxu0 0.0
    %622 = vmatpush1.msra.mxu0 %v610
    %623 = vmatprep.subr.mxu0 0.0
    %624 = vmatpush1.msra.mxu0 %v612
    %625 = vmatprep.subr.mxu0 0.0
    %626 = vmatpush1.msra.mxu0 %v614
    %627 = vmatprep.subr.mxu0 0.0
    %628 = vmatpush1.msra.mxu0 %v616
    %629 = vmatprep.subr.mxu0 0.0
    %630 = vmatpush1.msra.mxu0 0.0
    %631 = vmatprep.subr.mxu0 0.0
    %632 = vmatpush1.msra.mxu0 0.0
    %633 = vmatprep.subr.mxu0 0.0
    %634 = vmatpush1.msra.mxu0 0.0
    %635 = vmatprep.subr.mxu0 0.0
    %636 = vmatpush1.msra.mxu0 0.0
    %637 = vmatprep.subr.mxu0 0.0
    %638 = vmatpush1.msra.mxu0 0.0
    %639 = vmatprep.subr.mxu0 0.0
    %640 = vmatpush1.msra.mxu0 0.0
    %641 = vmatprep.subr.mxu0 0.0
    %642 = vmatpush1.msra.mxu0 0.0
    %643 = vmatprep.subr.mxu0 0.0
    %644 = vmatpush1.msra.mxu0 0.0
    %645 = vmatprep.subr.mxu0 0.0
    %646 = vmatpush1.msra.mxu0 0.0
    %647 = vmatprep.subr.mxu0 0.0
    %648 = vmatpush1.msra.mxu0 0.0
    %649 = vmatprep.subr.mxu0 0.0
    %650 = vmatpush1.msra.mxu0 0.0
    %651 = vmatprep.subr.mxu0 0.0
    %652 = vmatpush1.msra.mxu0 0.0
    %653 = vmatprep.subr.mxu0 0.0
    %654 = vmatpush1.msra.mxu0 0.0
    %655 = vmatprep.subr.mxu0 0.0
    %656 = vmatpush1.msra.mxu0 0.0
    %657 = vmatprep.subr.mxu0 0.0
    %658 = vmatpush1.msra.mxu0 0.0
    %659 = vmatprep.subr.mxu0 0.0
    %660 = vmatpush1.msra.mxu0 0.0
    %661 = vmatprep.subr.mxu0 0.0
    %662 = vmatpush1.msra.mxu0 0.0
    %663 = vmatprep.subr.mxu0 0.0
    %664 = vmatpush1.msra.mxu0 0.0
    %665 = vmatprep.subr.mxu0 0.0
    %666 = vmatpush1.msra.mxu0 0.0
    %667 = vmatprep.subr.mxu0 0.0
    %668 = vmatpush1.msra.mxu0 0.0
    %669 = vmatprep.subr.mxu0 0.0
    %670 = vmatpush1.msra.mxu0 0.0
    %671 = vmatprep.subr.mxu0 0.0
    %672 = vmatpush1.msra.mxu0 0.0
    %673 = vmatprep.subr.mxu0 0.0
    %674 = vmatpush1.msra.mxu0 0.0
    %675 = vmatprep.subr.mxu0 0.0
    %676 = vmatpush1.msra.mxu0 0.0
    %677 = vmatprep.subr.mxu0 0.0
    %678 = vmatpush1.msra.mxu0 0.0
    %679 = vmatprep.subr.mxu0 0.0
    %680 = vmatpush1.msra.mxu0 0.0
    %681 = vmatprep.subr.mxu0 0.0
    %682 = vmatpush1.msra.mxu0 0.0
    %683 = vmatprep.subr.mxu0 0.0
    %684 = vmatpush1.msra.mxu0 0.0
    %685 = vmatprep.mubr.f32.mxu0 0.0
    %686 = vmatmul.mubr.f32.gmra.mrb[0].mxu0 %v529
    %v687 = vpop.f32.mrb[0].mxu0
    %v688 = vadd.f32 0.0, %v687
    %v689 = vpop.f32.mrb[0].mxu0
    %690 = vmatprep.mubr.f32.mxu0 0.0
    %691 = vmatmul.mubr.f32.gmra.mrb[0].mxu0 %v532
    %v692 = vpop.f32.mrb[0].mxu0
    %v693 = vadd.f32 0.0, %v692
    %v694 = vpop.f32.mrb[0].mxu0
    %695 = vdwg.mxu0
    %v696 = vlaneseq
    %v697 = vshrl.u32 %v696, 7
    %v698 = vsub.s32 0, %v697
    %v699 = vrot.slane %v502, %v698
    %v701 = vsel %vm527, %v493, 0
    %703 = vmatprep.subr.mxu0 0.0
    %704 = vmatpush1.msra.mxu0 %v494
    %705 = vmatprep.subr.mxu0 0.0
    %706 = vmatpush1.msra.mxu0 %v495
    %707 = vmatprep.subr.mxu0 0.0
    %708 = vmatpush1.msra.mxu0 %v496
    %709 = vmatprep.subr.mxu0 0.0
    %710 = vmatpush1.msra.mxu0 %v497
    %711 = vmatprep.subr.mxu0 0.0
    %712 = vmatpush1.msra.mxu0 0.0
    %713 = vmatprep.subr.mxu0 0.0
    %714 = vmatpush1.msra.mxu0 0.0
    %715 = vmatprep.subr.mxu0 0.0
    %716 = vmatpush1.msra.mxu0 0.0
    %717 = vmatprep.subr.mxu0 0.0
    %718 = vmatpush1.msra.mxu0 0.0
    %719 = vmatprep.subr.mxu0 0.0
    %720 = vmatpush1.msra.mxu0 0.0
    %721 = vmatprep.subr.mxu0 0.0
    %722 = vmatpush1.msra.mxu0 0.0
    %723 = vmatprep.subr.mxu0 0.0
    %724 = vmatpush1.msra.mxu0 0.0
    %725 = vmatprep.subr.mxu0 0.0
    %726 = vmatpush1.msra.mxu0 0.0
    %727 = vmatprep.subr.mxu0 0.0
    %728 = vmatpush1.msra.mxu0 0.0
    %729 = vmatprep.subr.mxu0 0.0
    %730 = vmatpush1.msra.mxu0 0.0
    %731 = vmatprep.subr.mxu0 0.0
    %732 = vmatpush1.msra.mxu0 0.0
    %733 = vmatprep.subr.mxu0 0.0
    %734 = vmatpush1.msra.mxu0 0.0
    %735 = vmatprep.subr.mxu0 0.0
    %736 = vmatpush1.msra.mxu0 0.0
    %737 = vmatprep.subr.mxu0 0.0
    %738 = vmatpush1.msra.mxu0 0.0
    %739 = vmatprep.subr.mxu0 0.0
    %740 = vmatpush1.msra.mxu0 0.0
    %741 = vmatprep.subr.mxu0 0.0
    %742 = vmatpush1.msra.mxu0 0.0
    %743 = vmatprep.subr.mxu0 0.0
    %744 = vmatpush1.msra.mxu0 0.0
    %745 = vmatprep.subr.mxu0 0.0
    %746 = vmatpush1.msra.mxu0 0.0
    %747 = vmatprep.subr.mxu0 0.0
    %748 = vmatpush1.msra.mxu0 0.0
    %749 = vmatprep.subr.mxu0 0.0
    %750 = vmatpush1.msra.mxu0 0.0
    %751 = vmatprep.subr.mxu0 0.0
    %752 = vmatpush1.msra.mxu0 0.0
    %753 = vmatprep.subr.mxu0 0.0
    %754 = vmatpush1.msra.mxu0 0.0
    %755 = vmatprep.subr.mxu0 0.0
    %756 = vmatpush1.msra.mxu0 0.0
    %757 = vmatprep.subr.mxu0 0.0
    %758 = vmatpush1.msra.mxu0 0.0
    %759 = vmatprep.subr.mxu0 0.0
    %760 = vmatpush1.msra.mxu0 0.0
    %761 = vmatprep.subr.mxu0 0.0
    %762 = vmatpush1.msra.mxu0 0.0
    %763 = vmatprep.subr.mxu0 0.0
    %764 = vmatpush1.msra.mxu0 0.0
    %765 = vmatprep.subr.mxu0 0.0
    %766 = vmatpush1.msra.mxu0 0.0
    %767 = vmatprep.mubr.f32.mxu0 0.0
    %768 = vmatmul.mubr.f32.gmra.mrb[0].mxu0 %v701
    %v769 = vpop.f32.mrb[0].mxu0
    %v770 = vadd.f32 %v699, %v769
    %v771 = vpop.f32.mrb[0].mxu0
    %772 = vdwg.mxu0
    %773 = vrot.lane.b32.xlu0 %v494, 31
    %v774 = vpop.permute.xlu0 %773
    %775 = vrot.lane.b32.xlu0 %v495, 31
    %v776 = vpop.permute.xlu0 %775
    %777 = vrot.lane.b32.xlu0 %v496, 31
    %v778 = vpop.permute.xlu0 %777
    %779 = vrot.lane.b32.xlu0 %v497, 31
    %v780 = vpop.permute.xlu0 %779
    %v786 = vsel %vm527, %v770, 0
    %788 = vmatprep.subr.mxu0 0.0
    %789 = vmatpush1.msra.mxu0 %v774
    %790 = vmatprep.subr.mxu0 0.0
    %791 = vmatpush1.msra.mxu0 %v776
    %792 = vmatprep.subr.mxu0 0.0
    %793 = vmatpush1.msra.mxu0 %v778
    %794 = vmatprep.subr.mxu0 0.0
    %795 = vmatpush1.msra.mxu0 %v780
    %796 = vmatprep.subr.mxu0 0.0
    %797 = vmatpush1.msra.mxu0 0.0
    %798 = vmatprep.subr.mxu0 0.0
    %799 = vmatpush1.msra.mxu0 0.0
    %800 = vmatprep.subr.mxu0 0.0
    %801 = vmatpush1.msra.mxu0 0.0
    %802 = vmatprep.subr.mxu0 0.0
    %803 = vmatpush1.msra.mxu0 0.0
    %804 = vmatprep.subr.mxu0 0.0
    %805 = vmatpush1.msra.mxu0 0.0
    %806 = vmatprep.subr.mxu0 0.0
    %807 = vmatpush1.msra.mxu0 0.0
    %808 = vmatprep.subr.mxu0 0.0
    %809 = vmatpush1.msra.mxu0 0.0
    %810 = vmatprep.subr.mxu0 0.0
    %811 = vmatpush1.msra.mxu0 0.0
    %812 = vmatprep.subr.mxu0 0.0
    %813 = vmatpush1.msra.mxu0 0.0
    %814 = vmatprep.subr.mxu0 0.0
    %815 = vmatpush1.msra.mxu0 0.0
    %816 = vmatprep.subr.mxu0 0.0
    %817 = vmatpush1.msra.mxu0 0.0
    %818 = vmatprep.subr.mxu0 0.0
    %819 = vmatpush1.msra.mxu0 0.0
    %820 = vmatprep.subr.mxu0 0.0
    %821 = vmatpush1.msra.mxu0 0.0
    %822 = vmatprep.subr.mxu0 0.0
    %823 = vmatpush1.msra.mxu0 0.0
    %824 = vmatprep.subr.mxu0 0.0
    %825 = vmatpush1.msra.mxu0 0.0
    %826 = vmatprep.subr.mxu0 0.0
    %827 = vmatpush1.msra.mxu0 0.0
    %828 = vmatprep.subr.mxu0 0.0
    %829 = vmatpush1.msra.mxu0 0.0
    %830 = vmatprep.subr.mxu0 0.0
    %831 = vmatpush1.msra.mxu0 0.0
    %832 = vmatprep.subr.mxu0 0.0
    %833 = vmatpush1.msra.mxu0 0.0
    %834 = vmatprep.subr.mxu0 0.0
    %835 = vmatpush1.msra.mxu0 0.0
    %836 = vmatprep.subr.mxu0 0.0
    %837 = vmatpush1.msra.mxu0 0.0
    %838 = vmatprep.subr.mxu0 0.0
    %839 = vmatpush1.msra.mxu0 0.0
    %840 = vmatprep.subr.mxu0 0.0
    %841 = vmatpush1.msra.mxu0 0.0
    %842 = vmatprep.subr.mxu0 0.0
    %843 = vmatpush1.msra.mxu0 0.0
    %844 = vmatprep.subr.mxu0 0.0
    %845 = vmatpush1.msra.mxu0 0.0
    %846 = vmatprep.subr.mxu0 0.0
    %847 = vmatpush1.msra.mxu0 0.0
    %848 = vmatprep.subr.mxu0 0.0
    %849 = vmatpush1.msra.mxu0 0.0
    %850 = vmatprep.subr.mxu0 0.0
    %851 = vmatpush1.msra.mxu0 0.0
    %852 = vmatprep.mubr.f32.mxu0 0.0
    %853 = vmatmul.mubr.f32.gmra.mrb[0].mxu0 %v786
    %v854 = vpop.f32.mrb[0].mxu0
    %v855 = vadd.f32 0.0, %v854
    %v856 = vpop.f32.mrb[0].mxu0
    %857 = vdwg.mxu0
    %v859 = vsel %vm237, %v855, 0
    %861 = vmatprep.subr.mxu0 0.0
    %862 = vmatpush1.msra.mxu0 %v859
    %863 = vmatprep.subr.mxu0 0.0
    %864 = vmatpush1.msra.mxu0 0.0
    %865 = vmatprep.subr.mxu0 0.0
    %866 = vmatpush1.msra.mxu0 0.0
    %867 = vmatprep.subr.mxu0 0.0
    %868 = vmatpush1.msra.mxu0 0.0
    %869 = vmatprep.subr.mxu0 0.0
    %870 = vmatpush1.msra.mxu0 0.0
    %871 = vmatprep.subr.mxu0 0.0
    %872 = vmatpush1.msra.mxu0 0.0
    %873 = vmatprep.subr.mxu0 0.0
    %874 = vmatpush1.msra.mxu0 0.0
    %875 = vmatprep.subr.mxu0 0.0
    %876 = vmatpush1.msra.mxu0 0.0
    %877 = vmatprep.subr.mxu0 0.0
    %878 = vmatpush1.msra.mxu0 0.0
    %879 = vmatprep.subr.mxu0 0.0
    %880 = vmatpush1.msra.mxu0 0.0
    %881 = vmatprep.subr.mxu0 0.0
    %882 = vmatpush1.msra.mxu0 0.0
    %883 = vmatprep.subr.mxu0 0.0
    %884 = vmatpush1.msra.mxu0 0.0
    %885 = vmatprep.subr.mxu0 0.0
    %886 = vmatpush1.msra.mxu0 0.0
    %887 = vmatprep.subr.mxu0 0.0
    %888 = vmatpush1.msra.mxu0 0.0
    %889 = vmatprep.subr.mxu0 0.0
    %890 = vmatpush1.msra.mxu0 0.0
    %891 = vmatprep.subr.mxu0 0.0
    %892 = vmatpush1.msra.mxu0 0.0
    %893 = vmatprep.subr.mxu0 0.0
    %894 = vmatpush1.msra.mxu0 0.0
    %895 = vmatprep.subr.mxu0 0.0
    %896 = vmatpush1.msra.mxu0 0.0
    %897 = vmatprep.subr.mxu0 0.0
    %898 = vmatpush1.msra.mxu0 0.0
    %899 = vmatprep.subr.mxu0 0.0
    %900 = vmatpush1.msra.mxu0 0.0
    %901 = vmatprep.subr.mxu0 0.0
    %902 = vmatpush1.msra.mxu0 0.0
    %903 = vmatprep.subr.mxu0 0.0
    %904 = vmatpush1.msra.mxu0 0.0
    %905 = vmatprep.subr.mxu0 0.0
    %906 = vmatpush1.msra.mxu0 0.0
    %907 = vmatprep.subr.mxu0 0.0
    %908 = vmatpush1.msra.mxu0 0.0
    %909 = vmatprep.subr.mxu0 0.0
    %910 = vmatpush1.msra.mxu0 0.0
    %911 = vmatprep.subr.mxu0 0.0
    %912 = vmatpush1.msra.mxu0 0.0
    %913 = vmatprep.subr.mxu0 0.0
    %914 = vmatpush1.msra.mxu0 0.0
    %915 = vmatprep.subr.mxu0 0.0
    %916 = vmatpush1.msra.mxu0 0.0
    %917 = vmatprep.subr.mxu0 0.0
    %918 = vmatpush1.msra.mxu0 0.0
    %919 = vmatprep.subr.mxu0 0.0
    %920 = vmatpush1.msra.mxu0 0.0
    %921 = vmatprep.subr.mxu0 0.0
    %922 = vmatpush1.msra.mxu0 0.0
    %923 = vmatprep.subr.mxu0 0.0
    %924 = vmatpush1.msra.mxu0 0.0
    %925 = vmatprep.mubr.f32.mxu0 0.0
    %926 = vmatmul.mubr.f32.gmra.mrb[0].mxu0 %v233
    %v927 = vpop.f32.mrb[0].mxu0
    %v928 = vadd.f32 0.0, %v927
    %v929 = vpop.f32.mrb[0].mxu0
    %930 = vmatprep.mubr.f32.mxu0 0.0
    %931 = vmatmul.mubr.f32.gmra.mrb[0].mxu0 %v235
    %v932 = vpop.f32.mrb[0].mxu0
    %v933 = vadd.f32 0.0, %v932
    %v934 = vpop.f32.mrb[0].mxu0
    %935 = vdwg.mxu0
    %v936 = vadd.f32 %v688, %v928
    %v937 = vadd.f32 %v693, %v933
    %v938 = vlaneseq
    %v939 = vshrl.u32 %v938, 7
    %v940 = vsub.s32 0, %v939
    %v941 = vrot.slane %v506, %v940
    %v942 = vadd.f32 %v936, %v941
    %v943 = vadd.f32 %v937, %v941
    %v944 = vtanh.pop %v942
    %v945 = vtanh.pop %v943
    %v946 = vmul.f32 %v944, 1.442695
    %v947 = vpow.pop %v946
    %v948 = vmul.f32 %v945, 1.442695
    %v949 = vpow.pop %v948
    %950 = vmatprep.subr.mxu0 0.0
    %951 = vmatpush1.msra.mxu0 %v947
    %952 = vmatprep.subr.mxu0 0.0
    %953 = vmatpush1.msra.mxu0 %v949
    %954 = vmatprep.subr.mxu0 0.0
    %955 = vmatpush1.msra.mxu0 0.0
    %956 = vmatprep.subr.mxu0 0.0
    %957 = vmatpush1.msra.mxu0 0.0
    %958 = vmatprep.subr.mxu0 0.0
    %959 = vmatpush1.msra.mxu0 0.0
    %960 = vmatprep.subr.mxu0 0.0
    %961 = vmatpush1.msra.mxu0 0.0
    %962 = vmatprep.subr.mxu0 0.0
    %963 = vmatpush1.msra.mxu0 0.0
    %964 = vmatprep.subr.mxu0 0.0
    %965 = vmatpush1.msra.mxu0 0.0
    %966 = vmatprep.subr.mxu0 0.0
    %967 = vmatpush1.msra.mxu0 0.0
    %968 = vmatprep.subr.mxu0 0.0
    %969 = vmatpush1.msra.mxu0 0.0
    %970 = vmatprep.subr.mxu0 0.0
    %971 = vmatpush1.msra.mxu0 0.0
    %972 = vmatprep.subr.mxu0 0.0
    %973 = vmatpush1.msra.mxu0 0.0
    %974 = vmatprep.subr.mxu0 0.0
    %975 = vmatpush1.msra.mxu0 0.0
    %976 = vmatprep.subr.mxu0 0.0
    %977 = vmatpush1.msra.mxu0 0.0
    %978 = vmatprep.subr.mxu0 0.0
    %979 = vmatpush1.msra.mxu0 0.0
    %980 = vmatprep.subr.mxu0 0.0
    %981 = vmatpush1.msra.mxu0 0.0
    %982 = vmatprep.subr.mxu0 0.0
    %983 = vmatpush1.msra.mxu0 0.0
    %984 = vmatprep.subr.mxu0 0.0
    %985 = vmatpush1.msra.mxu0 0.0
    %986 = vmatprep.subr.mxu0 0.0
    %987 = vmatpush1.msra.mxu0 0.0
    %988 = vmatprep.subr.mxu0 0.0
    %989 = vmatpush1.msra.mxu0 0.0
    %990 = vmatprep.subr.mxu0 0.0
    %991 = vmatpush1.msra.mxu0 0.0
    %992 = vmatprep.subr.mxu0 0.0
    %993 = vmatpush1.msra.mxu0 0.0
    %994 = vmatprep.subr.mxu0 0.0
    %995 = vmatpush1.msra.mxu0 0.0
    %996 = vmatprep.subr.mxu0 0.0
    %997 = vmatpush1.msra.mxu0 0.0
    %998 = vmatprep.subr.mxu0 0.0
    %999 = vmatpush1.msra.mxu0 0.0
    %1000 = vmatprep.subr.mxu0 0.0
    %1001 = vmatpush1.msra.mxu0 0.0
    %1002 = vmatprep.subr.mxu0 0.0
    %1003 = vmatpush1.msra.mxu0 0.0
    %1004 = vmatprep.subr.mxu0 0.0
    %1005 = vmatpush1.msra.mxu0 0.0
    %1006 = vmatprep.subr.mxu0 0.0
    %1007 = vmatpush1.msra.mxu0 0.0
    %1008 = vmatprep.subr.mxu0 0.0
    %1009 = vmatpush1.msra.mxu0 0.0
    %1010 = vmatprep.subr.mxu0 0.0
    %1011 = vmatpush1.msra.mxu0 0.0
    %1012 = vmatprep.subr.mxu0 0.0
    %1013 = vmatpush1.msra.mxu0 0.0
    %1014 = vmatprep.mubr.f32.mxu0 0.0
    %1015 = vmatmul.mubr.f32.gmra.mrb[0].mxu0 %v154
    %v1016 = vpop.f32.mrb[0].mxu0
    %v1017 = vadd.f32 0.0, %v1016
    %v1018 = vpop.f32.mrb[0].mxu0
    %1019 = vdwg.mxu0
    %1021 = vset.pattern.permute.xlu0 0
    %1022 = vperm.xlu0 %1021, %v947
    %v1023 = vpop.permute.xlu0 %1022
    %1026 = vset.pattern.permute.xlu0 0
    %1027 = vperm.xlu0 %1026, %v949
    %v1028 = vpop.permute.xlu0 %1027
    %v1030 = vmul.f32 %v1023, %v601
    %v1031 = vmul.f32 %v1028, %v606
    %1032 = vmatprep.subr.mxu0 0.0
    %1033 = vmatpush1.msra.mxu0 %v1030
    %1034 = vmatprep.subr.mxu0 0.0
    %1035 = vmatpush1.msra.mxu0 %v1031
    %1036 = vmatprep.subr.mxu0 0.0
    %1037 = vmatpush1.msra.mxu0 0.0
    %1038 = vmatprep.subr.mxu0 0.0
    %1039 = vmatpush1.msra.mxu0 0.0
    %1040 = vmatprep.subr.mxu0 0.0
    %1041 = vmatpush1.msra.mxu0 0.0
    %1042 = vmatprep.subr.mxu0 0.0
    %1043 = vmatpush1.msra.mxu0 0.0
    %1044 = vmatprep.subr.mxu0 0.0
    %1045 = vmatpush1.msra.mxu0 0.0
    %1046 = vmatprep.subr.mxu0 0.0
    %1047 = vmatpush1.msra.mxu0 0.0
    %1048 = vmatprep.subr.mxu0 0.0
    %1049 = vmatpush1.msra.mxu0 0.0
    %1050 = vmatprep.subr.mxu0 0.0
    %1051 = vmatpush1.msra.mxu0 0.0
    %1052 = vmatprep.subr.mxu0 0.0
    %1053 = vmatpush1.msra.mxu0 0.0
    %1054 = vmatprep.subr.mxu0 0.0
    %1055 = vmatpush1.msra.mxu0 0.0
    %1056 = vmatprep.subr.mxu0 0.0
    %1057 = vmatpush1.msra.mxu0 0.0
    %1058 = vmatprep.subr.mxu0 0.0
    %1059 = vmatpush1.msra.mxu0 0.0
    %1060 = vmatprep.subr.mxu0 0.0
    %1061 = vmatpush1.msra.mxu0 0.0
    %1062 = vmatprep.subr.mxu0 0.0
    %1063 = vmatpush1.msra.mxu0 0.0
    %1064 = vmatprep.subr.mxu0 0.0
    %1065 = vmatpush1.msra.mxu0 0.0
    %1066 = vmatprep.subr.mxu0 0.0
    %1067 = vmatpush1.msra.mxu0 0.0
    %1068 = vmatprep.subr.mxu0 0.0
    %1069 = vmatpush1.msra.mxu0 0.0
    %1070 = vmatprep.subr.mxu0 0.0
    %1071 = vmatpush1.msra.mxu0 0.0
    %1072 = vmatprep.subr.mxu0 0.0
    %1073 = vmatpush1.msra.mxu0 0.0
    %1074 = vmatprep.subr.mxu0 0.0
    %1075 = vmatpush1.msra.mxu0 0.0
    %1076 = vmatprep.subr.mxu0 0.0
    %1077 = vmatpush1.msra.mxu0 0.0
    %1078 = vmatprep.subr.mxu0 0.0
    %1079 = vmatpush1.msra.mxu0 0.0
    %1080 = vmatprep.subr.mxu0 0.0
    %1081 = vmatpush1.msra.mxu0 0.0
    %1082 = vmatprep.subr.mxu0 0.0
    %1083 = vmatpush1.msra.mxu0 0.0
    %1084 = vmatprep.subr.mxu0 0.0
    %1085 = vmatpush1.msra.mxu0 0.0
    %1086 = vmatprep.subr.mxu0 0.0
    %1087 = vmatpush1.msra.mxu0 0.0
    %1088 = vmatprep.subr.mxu0 0.0
    %1089 = vmatpush1.msra.mxu0 0.0
    %1090 = vmatprep.subr.mxu0 0.0
    %1091 = vmatpush1.msra.mxu0 0.0
    %1092 = vmatprep.subr.mxu0 0.0
    %1093 = vmatpush1.msra.mxu0 0.0
    %1094 = vmatprep.subr.mxu0 0.0
    %1095 = vmatpush1.msra.mxu0 0.0
    %1096 = vmatprep.mubr.f32.mxu0 0.0
    %1097 = vmatmul.mubr.f32.gmra.mrb[0].mxu0 %v154
    %v1098 = vpop.f32.mrb[0].mxu0
    %v1099 = vadd.f32 0.0, %v1098
    %v1100 = vpop.f32.mrb[0].mxu0
    %1101 = vdwg.mxu0
    %v1102 = vrcp.pop %v1017
    %1104 = vset.pattern.permute.xlu0 0
    %1105 = vperm.xlu0 %1104, %v1102
    %v1106 = vpop.permute.xlu0 %1105
    %v1108 = vmul.f32 %v1099, %v1106
    %v1109 = vlaneseq
    %v1110 = vshrl.u32 %v1109, 7
    %v1111 = vsub.s32 0, %v1110
    %v1112 = vrot.slane %v504, %v1111
    %1113 = vrot.lane.b32.xlu0 %v494, 64
    %v1114 = vpop.permute.xlu0 %1113
    %1115 = vrot.lane.b32.xlu0 %v495, 64
    %v1116 = vpop.permute.xlu0 %1115
    %1117 = vrot.lane.b32.xlu0 %v496, 64
    %v1118 = vpop.permute.xlu0 %1117
    %1119 = vrot.lane.b32.xlu0 %v497, 64
    %v1120 = vpop.permute.xlu0 %1119
    %v1126 = vsel %vm527, %v1108, 0
    %1128 = vmatprep.subr.mxu0 0.0
    %1129 = vmatpush1.msra.mxu0 %v1114
    %1130 = vmatprep.subr.mxu0 0.0
    %1131 = vmatpush1.msra.mxu0 %v1116
    %1132 = vmatprep.subr.mxu0 0.0
    %1133 = vmatpush1.msra.mxu0 %v1118
    %1134 = vmatprep.subr.mxu0 0.0
    %1135 = vmatpush1.msra.mxu0 %v1120
    %1136 = vmatprep.subr.mxu0 0.0
    %1137 = vmatpush1.msra.mxu0 0.0
    %1138 = vmatprep.subr.mxu0 0.0
    %1139 = vmatpush1.msra.mxu0 0.0
    %1140 = vmatprep.subr.mxu0 0.0
    %1141 = vmatpush1.msra.mxu0 0.0
    %1142 = vmatprep.subr.mxu0 0.0
    %1143 = vmatpush1.msra.mxu0 0.0
    %1144 = vmatprep.subr.mxu0 0.0
    %1145 = vmatpush1.msra.mxu0 0.0
    %1146 = vmatprep.subr.mxu0 0.0
    %1147 = vmatpush1.msra.mxu0 0.0
    %1148 = vmatprep.subr.mxu0 0.0
    %1149 = vmatpush1.msra.mxu0 0.0
    %1150 = vmatprep.subr.mxu0 0.0
    %1151 = vmatpush1.msra.mxu0 0.0
    %1152 = vmatprep.subr.mxu0 0.0
    %1153 = vmatpush1.msra.mxu0 0.0
    %1154 = vmatprep.subr.mxu0 0.0
    %1155 = vmatpush1.msra.mxu0 0.0
    %1156 = vmatprep.subr.mxu0 0.0
    %1157 = vmatpush1.msra.mxu0 0.0
    %1158 = vmatprep.subr.mxu0 0.0
    %1159 = vmatpush1.msra.mxu0 0.0
    %1160 = vmatprep.subr.mxu0 0.0
    %1161 = vmatpush1.msra.mxu0 0.0
    %1162 = vmatprep.subr.mxu0 0.0
    %1163 = vmatpush1.msra.mxu0 0.0
    %1164 = vmatprep.subr.mxu0 0.0
    %1165 = vmatpush1.msra.mxu0 0.0
    %1166 = vmatprep.subr.mxu0 0.0
    %1167 = vmatpush1.msra.mxu0 0.0
    %1168 = vmatprep.subr.mxu0 0.0
    %1169 = vmatpush1.msra.mxu0 0.0
    %1170 = vmatprep.subr.mxu0 0.0
    %1171 = vmatpush1.msra.mxu0 0.0
    %1172 = vmatprep.subr.mxu0 0.0
    %1173 = vmatpush1.msra.mxu0 0.0
    %1174 = vmatprep.subr.mxu0 0.0
    %1175 = vmatpush1.msra.mxu0 0.0
    %1176 = vmatprep.subr.mxu0 0.0
    %1177 = vmatpush1.msra.mxu0 0.0
    %1178 = vmatprep.subr.mxu0 0.0
    %1179 = vmatpush1.msra.mxu0 0.0
    %1180 = vmatprep.subr.mxu0 0.0
    %1181 = vmatpush1.msra.mxu0 0.0
    %1182 = vmatprep.subr.mxu0 0.0
    %1183 = vmatpush1.msra.mxu0 0.0
    %1184 = vmatprep.subr.mxu0 0.0
    %1185 = vmatpush1.msra.mxu0 0.0
    %1186 = vmatprep.subr.mxu0 0.0
    %1187 = vmatpush1.msra.mxu0 0.0
    %1188 = vmatprep.subr.mxu0 0.0
    %1189 = vmatpush1.msra.mxu0 0.0
    %1190 = vmatprep.subr.mxu0 0.0
    %1191 = vmatpush1.msra.mxu0 0.0
    %1192 = vmatprep.mubr.f32.mxu0 0.0
    %1193 = vmatmul.mubr.f32.gmra.mrb[0].mxu0 %v1126
    %v1194 = vpop.f32.mrb[0].mxu0
    %v1195 = vadd.f32 %v1112, %v1194
    %v1196 = vpop.f32.mrb[0].mxu0
    %1197 = vdwg.mxu0
    %v1198 = vadd.f32 %v1195, %v770
    %v1200 = vsel %vm527, %v1198, 0
    %1202 = vmatprep.subr.mxu0 0.0
    %1203 = vmatpush1.msra.mxu0 %v494
    %1204 = vmatprep.subr.mxu0 0.0
    %1205 = vmatpush1.msra.mxu0 %v495
    %1206 = vmatprep.subr.mxu0 0.0
    %1207 = vmatpush1.msra.mxu0 %v496
    %1208 = vmatprep.subr.mxu0 0.0
    %1209 = vmatpush1.msra.mxu0 %v497
    %1210 = vmatprep.subr.mxu0 0.0
    %1211 = vmatpush1.msra.mxu0 0.0
    %1212 = vmatprep.subr.mxu0 0.0
    %1213 = vmatpush1.msra.mxu0 0.0
    %1214 = vmatprep.subr.mxu0 0.0
    %1215 = vmatpush1.msra.mxu0 0.0
    %1216 = vmatprep.subr.mxu0 0.0
    %1217 = vmatpush1.msra.mxu0 0.0
    %1218 = vmatprep.subr.mxu0 0.0
    %1219 = vmatpush1.msra.mxu0 0.0
    %1220 = vmatprep.subr.mxu0 0.0
    %1221 = vmatpush1.msra.mxu0 0.0
    %1222 = vmatprep.subr.mxu0 0.0
    %1223 = vmatpush1.msra.mxu0 0.0
    %1224 = vmatprep.subr.mxu0 0.0
    %1225 = vmatpush1.msra.mxu0 0.0
    %1226 = vmatprep.subr.mxu0 0.0
    %1227 = vmatpush1.msra.mxu0 0.0
    %1228 = vmatprep.subr.mxu0 0.0
    %1229 = vmatpush1.msra.mxu0 0.0
    %1230 = vmatprep.subr.mxu0 0.0
    %1231 = vmatpush1.msra.mxu0 0.0
    %1232 = vmatprep.subr.mxu0 0.0
    %1233 = vmatpush1.msra.mxu0 0.0
    %1234 = vmatprep.subr.mxu0 0.0
    %1235 = vmatpush1.msra.mxu0 0.0
    %1236 = vmatprep.subr.mxu0 0.0
    %1237 = vmatpush1.msra.mxu0 0.0
    %1238 = vmatprep.subr.mxu0 0.0
    %1239 = vmatpush1.msra.mxu0 0.0
    %1240 = vmatprep.subr.mxu0 0.0
    %1241 = vmatpush1.msra.mxu0 0.0
    %1242 = vmatprep.subr.mxu0 0.0
    %1243 = vmatpush1.msra.mxu0 0.0
    %1244 = vmatprep.subr.mxu0 0.0
    %1245 = vmatpush1.msra.mxu0 0.0
    %1246 = vmatprep.subr.mxu0 0.0
    %1247 = vmatpush1.msra.mxu0 0.0
    %1248 = vmatprep.subr.mxu0 0.0
    %1249 = vmatpush1.msra.mxu0 0.0
    %1250 = vmatprep.subr.mxu0 0.0
    %1251 = vmatpush1.msra.mxu0 0.0
    %1252 = vmatprep.subr.mxu0 0.0
    %1253 = vmatpush1.msra.mxu0 0.0
    %1254 = vmatprep.subr.mxu0 0.0
    %1255 = vmatpush1.msra.mxu0 0.0
    %1256 = vmatprep.subr.mxu0 0.0
    %1257 = vmatpush1.msra.mxu0 0.0
    %1258 = vmatprep.subr.mxu0 0.0
    %1259 = vmatpush1.msra.mxu0 0.0
    %1260 = vmatprep.subr.mxu0 0.0
    %1261 = vmatpush1.msra.mxu0 0.0
    %1262 = vmatprep.subr.mxu0 0.0
    %1263 = vmatpush1.msra.mxu0 0.0
    %1264 = vmatprep.subr.mxu0 0.0
    %1265 = vmatpush1.msra.mxu0 0.0
    %1266 = vmatprep.mubr.f32.mxu0 0.0
    %1267 = vmatmul.mubr.f32.gmra.mrb[0].mxu0 %v1200
    %v1268 = vpop.f32.mrb[0].mxu0
    %v1269 = vadd.f32 %v699, %v1268
    %v1270 = vpop.f32.mrb[0].mxu0
    %1271 = vdwg.mxu0
    %v1273 = vsel %vm527, %v1269, 0
    %1275 = vmatprep.subr.mxu0 0.0
    %1276 = vmatpush1.msra.mxu0 %v774
    %1277 = vmatprep.subr.mxu0 0.0
    %1278 = vmatpush1.msra.mxu0 %v776
    %1279 = vmatprep.subr.mxu0 0.0
    %1280 = vmatpush1.msra.mxu0 %v778
    %1281 = vmatprep.subr.mxu0 0.0
    %1282 = vmatpush1.msra.mxu0 %v780
    %1283 = vmatprep.subr.mxu0 0.0
    %1284 = vmatpush1.msra.mxu0 0.0
    %1285 = vmatprep.subr.mxu0 0.0
    %1286 = vmatpush1.msra.mxu0 0.0
    %1287 = vmatprep.subr.mxu0 0.0
    %1288 = vmatpush1.msra.mxu0 0.0
    %1289 = vmatprep.subr.mxu0 0.0
    %1290 = vmatpush1.msra.mxu0 0.0
    %1291 = vmatprep.subr.mxu0 0.0
    %1292 = vmatpush1.msra.mxu0 0.0
    %1293 = vmatprep.subr.mxu0 0.0
    %1294 = vmatpush1.msra.mxu0 0.0
    %1295 = vmatprep.subr.mxu0 0.0
    %1296 = vmatpush1.msra.mxu0 0.0
    %1297 = vmatprep.subr.mxu0 0.0
    %1298 = vmatpush1.msra.mxu0 0.0
    %1299 = vmatprep.subr.mxu0 0.0
    %1300 = vmatpush1.msra.mxu0 0.0
    %1301 = vmatprep.subr.mxu0 0.0
    %1302 = vmatpush1.msra.mxu0 0.0
    %1303 = vmatprep.subr.mxu0 0.0
    %1304 = vmatpush1.msra.mxu0 0.0
    %1305 = vmatprep.subr.mxu0 0.0
    %1306 = vmatpush1.msra.mxu0 0.0
    %1307 = vmatprep.subr.mxu0 0.0
    %1308 = vmatpush1.msra.mxu0 0.0
    %1309 = vmatprep.subr.mxu0 0.0
    %1310 = vmatpush1.msra.mxu0 0.0
    %1311 = vmatprep.subr.mxu0 0.0
    %1312 = vmatpush1.msra.mxu0 0.0
    %1313 = vmatprep.subr.mxu0 0.0
    %1314 = vmatpush1.msra.mxu0 0.0
    %1315 = vmatprep.subr.mxu0 0.0
    %1316 = vmatpush1.msra.mxu0 0.0
    %1317 = vmatprep.subr.mxu0 0.0
    %1318 = vmatpush1.msra.mxu0 0.0
    %1319 = vmatprep.subr.mxu0 0.0
    %1320 = vmatpush1.msra.mxu0 0.0
    %1321 = vmatprep.subr.mxu0 0.0
    %1322 = vmatpush1.msra.mxu0 0.0
    %1323 = vmatprep.subr.mxu0 0.0
    %1324 = vmatpush1.msra.mxu0 0.0
    %1325 = vmatprep.subr.mxu0 0.0
    %1326 = vmatpush1.msra.mxu0 0.0
    %1327 = vmatprep.subr.mxu0 0.0
    %1328 = vmatpush1.msra.mxu0 0.0
    %1329 = vmatprep.subr.mxu0 0.0
    %1330 = vmatpush1.msra.mxu0 0.0
    %1331 = vmatprep.subr.mxu0 0.0
    %1332 = vmatpush1.msra.mxu0 0.0
    %1333 = vmatprep.subr.mxu0 0.0
    %1334 = vmatpush1.msra.mxu0 0.0
    %1335 = vmatprep.subr.mxu0 0.0
    %1336 = vmatpush1.msra.mxu0 0.0
    %1337 = vmatprep.subr.mxu0 0.0
    %1338 = vmatpush1.msra.mxu0 0.0
    %1339 = vmatprep.mubr.f32.mxu0 0.0
    %1340 = vmatmul.mubr.f32.gmra.mrb[0].mxu0 %v1273
    %v1341 = vpop.f32.mrb[0].mxu0
    %v1342 = vadd.f32 0.0, %v1341
    %v1343 = vpop.f32.mrb[0].mxu0
    %1344 = vdwg.mxu0
    %v1346 = vsel %vm237, %v1342, 0
    %1348 = vmatprep.subr.mxu0 0.0
    %1349 = vmatpush1.msra.mxu0 %v1346
    %1350 = vmatprep.subr.mxu0 0.0
    %1351 = vmatpush1.msra.mxu0 0.0
    %1352 = vmatprep.subr.mxu0 0.0
    %1353 = vmatpush1.msra.mxu0 0.0
    %1354 = vmatprep.subr.mxu0 0.0
    %1355 = vmatpush1.msra.mxu0 0.0
    %1356 = vmatprep.subr.mxu0 0.0
    %1357 = vmatpush1.msra.mxu0 0.0
    %1358 = vmatprep.subr.mxu0 0.0
    %1359 = vmatpush1.msra.mxu0 0.0
    %1360 = vmatprep.subr.mxu0 0.0
    %1361 = vmatpush1.msra.mxu0 0.0
    %1362 = vmatprep.subr.mxu0 0.0
    %1363 = vmatpush1.msra.mxu0 0.0
    %1364 = vmatprep.subr.mxu0 0.0
    %1365 = vmatpush1.msra.mxu0 0.0
    %1366 = vmatprep.subr.mxu0 0.0
    %1367 = vmatpush1.msra.mxu0 0.0
    %1368 = vmatprep.subr.mxu0 0.0
    %1369 = vmatpush1.msra.mxu0 0.0
    %1370 = vmatprep.subr.mxu0 0.0
    %1371 = vmatpush1.msra.mxu0 0.0
    %1372 = vmatprep.subr.mxu0 0.0
    %1373 = vmatpush1.msra.mxu0 0.0
    %1374 = vmatprep.subr.mxu0 0.0
    %1375 = vmatpush1.msra.mxu0 0.0
    %1376 = vmatprep.subr.mxu0 0.0
    %1377 = vmatpush1.msra.mxu0 0.0
    %1378 = vmatprep.subr.mxu0 0.0
    %1379 = vmatpush1.msra.mxu0 0.0
    %1380 = vmatprep.subr.mxu0 0.0
    %1381 = vmatpush1.msra.mxu0 0.0
    %1382 = vmatprep.subr.mxu0 0.0
    %1383 = vmatpush1.msra.mxu0 0.0
    %1384 = vmatprep.subr.mxu0 0.0
    %1385 = vmatpush1.msra.mxu0 0.0
    %1386 = vmatprep.subr.mxu0 0.0
    %1387 = vmatpush1.msra.mxu0 0.0
    %1388 = vmatprep.subr.mxu0 0.0
    %1389 = vmatpush1.msra.mxu0 0.0
    %1390 = vmatprep.subr.mxu0 0.0
    %1391 = vmatpush1.msra.mxu0 0.0
    %1392 = vmatprep.subr.mxu0 0.0
    %1393 = vmatpush1.msra.mxu0 0.0
    %1394 = vmatprep.subr.mxu0 0.0
    %1395 = vmatpush1.msra.mxu0 0.0
    %1396 = vmatprep.subr.mxu0 0.0
    %1397 = vmatpush1.msra.mxu0 0.0
    %1398 = vmatprep.subr.mxu0 0.0
    %1399 = vmatpush1.msra.mxu0 0.0
    %1400 = vmatprep.subr.mxu0 0.0
    %1401 = vmatpush1.msra.mxu0 0.0
    %1402 = vmatprep.subr.mxu0 0.0
    %1403 = vmatpush1.msra.mxu0 0.0
    %1404 = vmatprep.subr.mxu0 0.0
    %1405 = vmatpush1.msra.mxu0 0.0
    %1406 = vmatprep.subr.mxu0 0.0
    %1407 = vmatpush1.msra.mxu0 0.0
    %1408 = vmatprep.subr.mxu0 0.0
    %1409 = vmatpush1.msra.mxu0 0.0
    %1410 = vmatprep.subr.mxu0 0.0
    %1411 = vmatpush1.msra.mxu0 0.0
    %1412 = vmatprep.mubr.f32.mxu0 0.0
    %1413 = vmatmul.mubr.f32.gmra.mrb[0].mxu0 %v233
    %v1414 = vpop.f32.mrb[0].mxu0
    %v1415 = vadd.f32 0.0, %v1414
    %v1416 = vpop.f32.mrb[0].mxu0
    %1417 = vmatprep.mubr.f32.mxu0 0.0
    %1418 = vmatmul.mubr.f32.gmra.mrb[0].mxu0 %v235
    %v1419 = vpop.f32.mrb[0].mxu0
    %v1420 = vadd.f32 0.0, %v1419
    %v1421 = vpop.f32.mrb[0].mxu0
    %1422 = vdwg.mxu0
    %v1423 = vadd.f32 %v688, %v1415
    %v1424 = vadd.f32 %v693, %v1420
    %v1425 = vadd.f32 %v1423, %v941
    %v1426 = vadd.f32 %v1424, %v941
    %v1427 = vtanh.pop %v1425
    %v1428 = vtanh.pop %v1426
    %v1429 = vmul.f32 %v1427, 1.442695
    %v1430 = vpow.pop %v1429
    %v1431 = vmul.f32 %v1428, 1.442695
    %v1432 = vpow.pop %v1431
    %1433 = vmatprep.subr.mxu0 0.0
    %1434 = vmatpush1.msra.mxu0 %v1430
    %1435 = vmatprep.subr.mxu0 0.0
    %1436 = vmatpush1.msra.mxu0 %v1432
    %1437 = vmatprep.subr.mxu0 0.0
    %1438 = vmatpush1.msra.mxu0 0.0
    %1439 = vmatprep.subr.mxu0 0.0
    %1440 = vmatpush1.msra.mxu0 0.0
    %1441 = vmatprep.subr.mxu0 0.0
    %1442 = vmatpush1.msra.mxu0 0.0
    %1443 = vmatprep.subr.mxu0 0.0
    %1444 = vmatpush1.msra.mxu0 0.0
    %1445 = vmatprep.subr.mxu0 0.0
    %1446 = vmatpush1.msra.mxu0 0.0
    %1447 = vmatprep.subr.mxu0 0.0
    %1448 = vmatpush1.msra.mxu0 0.0
    %1449 = vmatprep.subr.mxu0 0.0
    %1450 = vmatpush1.msra.mxu0 0.0
    %1451 = vmatprep.subr.mxu0 0.0
    %1452 = vmatpush1.msra.mxu0 0.0
    %1453 = vmatprep.subr.mxu0 0.0
    %1454 = vmatpush1.msra.mxu0 0.0
    %1455 = vmatprep.subr.mxu0 0.0
    %1456 = vmatpush1.msra.mxu0 0.0
    %1457 = vmatprep.subr.mxu0 0.0
    %1458 = vmatpush1.msra.mxu0 0.0
    %1459 = vmatprep.subr.mxu0 0.0
    %1460 = vmatpush1.msra.mxu0 0.0
    %1461 = vmatprep.subr.mxu0 0.0
    %1462 = vmatpush1.msra.mxu0 0.0
    %1463 = vmatprep.subr.mxu0 0.0
    %1464 = vmatpush1.msra.mxu0 0.0
    %1465 = vmatprep.subr.mxu0 0.0
    %1466 = vmatpush1.msra.mxu0 0.0
    %1467 = vmatprep.subr.mxu0 0.0
    %1468 = vmatpush1.msra.mxu0 0.0
    %1469 = vmatprep.subr.mxu0 0.0
    %1470 = vmatpush1.msra.mxu0 0.0
    %1471 = vmatprep.subr.mxu0 0.0
    %1472 = vmatpush1.msra.mxu0 0.0
    %1473 = vmatprep.subr.mxu0 0.0
    %1474 = vmatpush1.msra.mxu0 0.0
    %1475 = vmatprep.subr.mxu0 0.0
    %1476 = vmatpush1.msra.mxu0 0.0
    %1477 = vmatprep.subr.mxu0 0.0
    %1478 = vmatpush1.msra.mxu0 0.0
    %1479 = vmatprep.subr.mxu0 0.0
    %1480 = vmatpush1.msra.mxu0 0.0
    %1481 = vmatprep.subr.mxu0 0.0
    %1482 = vmatpush1.msra.mxu0 0.0
    %1483 = vmatprep.subr.mxu0 0.0
    %1484 = vmatpush1.msra.mxu0 0.0
    %1485 = vmatprep.subr.mxu0 0.0
    %1486 = vmatpush1.msra.mxu0 0.0
    %1487 = vmatprep.subr.mxu0 0.0
    %1488 = vmatpush1.msra.mxu0 0.0
    %1489 = vmatprep.subr.mxu0 0.0
    %1490 = vmatpush1.msra.mxu0 0.0
    %1491 = vmatprep.subr.mxu0 0.0
    %1492 = vmatpush1.msra.mxu0 0.0
    %1493 = vmatprep.subr.mxu0 0.0
    %1494 = vmatpush1.msra.mxu0 0.0
    %1495 = vmatprep.subr.mxu0 0.0
    %1496 = vmatpush1.msra.mxu0 0.0
    %1497 = vmatprep.mubr.f32.mxu0 0.0
    %1498 = vmatmul.mubr.f32.gmra.mrb[0].mxu0 %v154
    %v1499 = vpop.f32.mrb[0].mxu0
    %v1500 = vadd.f32 0.0, %v1499
    %v1501 = vpop.f32.mrb[0].mxu0
    %1502 = vdwg.mxu0
    %1504 = vset.pattern.permute.xlu0 0
    %1505 = vperm.xlu0 %1504, %v1430
    %v1506 = vpop.permute.xlu0 %1505
    %1509 = vset.pattern.permute.xlu0 0
    %1510 = vperm.xlu0 %1509, %v1432
    %v1511 = vpop.permute.xlu0 %1510
    %v1513 = vmul.f32 %v1506, %v601
    %v1514 = vmul.f32 %v1511, %v606
    %1515 = vmatprep.subr.mxu0 0.0
    %1516 = vmatpush1.msra.mxu0 %v1513
    %1517 = vmatprep.subr.mxu0 0.0
    %1518 = vmatpush1.msra.mxu0 %v1514
    %1519 = vmatprep.subr.mxu0 0.0
    %1520 = vmatpush1.msra.mxu0 0.0
    %1521 = vmatprep.subr.mxu0 0.0
    %1522 = vmatpush1.msra.mxu0 0.0
    %1523 = vmatprep.subr.mxu0 0.0
    %1524 = vmatpush1.msra.mxu0 0.0
    %1525 = vmatprep.subr.mxu0 0.0
    %1526 = vmatpush1.msra.mxu0 0.0
    %1527 = vmatprep.subr.mxu0 0.0
    %1528 = vmatpush1.msra.mxu0 0.0
    %1529 = vmatprep.subr.mxu0 0.0
    %1530 = vmatpush1.msra.mxu0 0.0
    %1531 = vmatprep.subr.mxu0 0.0
    %1532 = vmatpush1.msra.mxu0 0.0
    %1533 = vmatprep.subr.mxu0 0.0
    %1534 = vmatpush1.msra.mxu0 0.0
    %1535 = vmatprep.subr.mxu0 0.0
    %1536 = vmatpush1.msra.mxu0 0.0
    %1537 = vmatprep.subr.mxu0 0.0
    %1538 = vmatpush1.msra.mxu0 0.0
    %1539 = vmatprep.subr.mxu0 0.0
    %1540 = vmatpush1.msra.mxu0 0.0
    %1541 = vmatprep.subr.mxu0 0.0
    %1542 = vmatpush1.msra.mxu0 0.0
    %1543 = vmatprep.subr.mxu0 0.0
    %1544 = vmatpush1.msra.mxu0 0.0
    %1545 = vmatprep.subr.mxu0 0.0
    %1546 = vmatpush1.msra.mxu0 0.0
    %1547 = vmatprep.subr.mxu0 0.0
    %1548 = vmatpush1.msra.mxu0 0.0
    %1549 = vmatprep.subr.mxu0 0.0
    %1550 = vmatpush1.msra.mxu0 0.0
    %1551 = vmatprep.subr.mxu0 0.0
    %1552 = vmatpush1.msra.mxu0 0.0
    %1553 = vmatprep.subr.mxu0 0.0
    %1554 = vmatpush1.msra.mxu0 0.0
    %1555 = vmatprep.subr.mxu0 0.0
    %1556 = vmatpush1.msra.mxu0 0.0
    %1557 = vmatprep.subr.mxu0 0.0
    %1558 = vmatpush1.msra.mxu0 0.0
    %1559 = vmatprep.subr.mxu0 0.0
    %1560 = vmatpush1.msra.mxu0 0.0
    %1561 = vmatprep.subr.mxu0 0.0
    %1562 = vmatpush1.msra.mxu0 0.0
    %1563 = vmatprep.subr.mxu0 0.0
    %1564 = vmatpush1.msra.mxu0 0.0
    %1565 = vmatprep.subr.mxu0 0.0
    %1566 = vmatpush1.msra.mxu0 0.0
    %1567 = vmatprep.subr.mxu0 0.0
    %1568 = vmatpush1.msra.mxu0 0.0
    %1569 = vmatprep.subr.mxu0 0.0
    %1570 = vmatpush1.msra.mxu0 0.0
    %1571 = vmatprep.subr.mxu0 0.0
    %1572 = vmatpush1.msra.mxu0 0.0
    %1573 = vmatprep.subr.mxu0 0.0
    %1574 = vmatpush1.msra.mxu0 0.0
    %1575 = vmatprep.subr.mxu0 0.0
    %1576 = vmatpush1.msra.mxu0 0.0
    %1577 = vmatprep.subr.mxu0 0.0
    %1578 = vmatpush1.msra.mxu0 0.0
    %1579 = vmatprep.mubr.f32.mxu0 0.0
    %1580 = vmatmul.mubr.f32.gmra.mrb[0].mxu0 %v154
    %v1581 = vpop.f32.mrb[0].mxu0
    %v1582 = vadd.f32 0.0, %v1581
    %v1583 = vpop.f32.mrb[0].mxu0
    %1584 = vdwg.mxu0
    %v1585 = vrcp.pop %v1500
    %1587 = vset.pattern.permute.xlu0 0
    %1588 = vperm.xlu0 %1587, %v1585
    %v1589 = vpop.permute.xlu0 %1588
    %v1591 = vmul.f32 %v1582, %v1589
    %v1593 = vsel %vm527, %v1591, 0
    %1595 = vmatprep.subr.mxu0 0.0
    %1596 = vmatpush1.msra.mxu0 %v1114
    %1597 = vmatprep.subr.mxu0 0.0
    %1598 = vmatpush1.msra.mxu0 %v1116
    %1599 = vmatprep.subr.mxu0 0.0
    %1600 = vmatpush1.msra.mxu0 %v1118
    %1601 = vmatprep.subr.mxu0 0.0
    %1602 = vmatpush1.msra.mxu0 %v1120
    %1603 = vmatprep.subr.mxu0 0.0
    %1604 = vmatpush1.msra.mxu0 0.0
    %1605 = vmatprep.subr.mxu0 0.0
    %1606 = vmatpush1.msra.mxu0 0.0
    %1607 = vmatprep.subr.mxu0 0.0
    %1608 = vmatpush1.msra.mxu0 0.0
    %1609 = vmatprep.subr.mxu0 0.0
    %1610 = vmatpush1.msra.mxu0 0.0
    %1611 = vmatprep.subr.mxu0 0.0
    %1612 = vmatpush1.msra.mxu0 0.0
    %1613 = vmatprep.subr.mxu0 0.0
    %1614 = vmatpush1.msra.mxu0 0.0
    %1615 = vmatprep.subr.mxu0 0.0
    %1616 = vmatpush1.msra.mxu0 0.0
    %1617 = vmatprep.subr.mxu0 0.0
    %1618 = vmatpush1.msra.mxu0 0.0
    %1619 = vmatprep.subr.mxu0 0.0
    %1620 = vmatpush1.msra.mxu0 0.0
    %1621 = vmatprep.subr.mxu0 0.0
    %1622 = vmatpush1.msra.mxu0 0.0
    %1623 = vmatprep.subr.mxu0 0.0
    %1624 = vmatpush1.msra.mxu0 0.0
    %1625 = vmatprep.subr.mxu0 0.0
    %1626 = vmatpush1.msra.mxu0 0.0
    %1627 = vmatprep.subr.mxu0 0.0
    %1628 = vmatpush1.msra.mxu0 0.0
    %1629 = vmatprep.subr.mxu0 0.0
    %1630 = vmatpush1.msra.mxu0 0.0
    %1631 = vmatprep.subr.mxu0 0.0
    %1632 = vmatpush1.msra.mxu0 0.0
    %1633 = vmatprep.subr.mxu0 0.0
    %1634 = vmatpush1.msra.mxu0 0.0
    %1635 = vmatprep.subr.mxu0 0.0
    %1636 = vmatpush1.msra.mxu0 0.0
    %1637 = vmatprep.subr.mxu0 0.0
    %1638 = vmatpush1.msra.mxu0 0.0
    %1639 = vmatprep.subr.mxu0 0.0
    %1640 = vmatpush1.msra.mxu0 0.0
    %1641 = vmatprep.subr.mxu0 0.0
    %1642 = vmatpush1.msra.mxu0 0.0
    %1643 = vmatprep.subr.mxu0 0.0
    %1644 = vmatpush1.msra.mxu0 0.0
    %1645 = vmatprep.subr.mxu0 0.0
    %1646 = vmatpush1.msra.mxu0 0.0
    %1647 = vmatprep.subr.mxu0 0.0
    %1648 = vmatpush1.msra.mxu0 0.0
    %1649 = vmatprep.subr.mxu0 0.0
    %1650 = vmatpush1.msra.mxu0 0.0
    %1651 = vmatprep.subr.mxu0 0.0
    %1652 = vmatpush1.msra.mxu0 0.0
    %1653 = vmatprep.subr.mxu0 0.0
    %1654 = vmatpush1.msra.mxu0 0.0
    %1655 = vmatprep.subr.mxu0 0.0
    %1656 = vmatpush1.msra.mxu0 0.0
    %1657 = vmatprep.subr.mxu0 0.0
    %1658 = vmatpush1.msra.mxu0 0.0
    %1659 = vmatprep.mubr.f32.mxu0 0.0
    %1660 = vmatmul.mubr.f32.gmra.mrb[0].mxu0 %v1593
    %v1661 = vpop.f32.mrb[0].mxu0
    %v1662 = vadd.f32 %v1112, %v1661
    %v1663 = vpop.f32.mrb[0].mxu0
    %1664 = vdwg.mxu0
    %v1665 = vadd.f32 %v1662, %v1269
    %v1667 = vsel %vm527, %v1665, 0
    %1669 = vmatprep.subr.mxu0 0.0
    %1670 = vmatpush1.msra.mxu0 %v494
    %1671 = vmatprep.subr.mxu0 0.0
    %1672 = vmatpush1.msra.mxu0 %v495
    %1673 = vmatprep.subr.mxu0 0.0
    %1674 = vmatpush1.msra.mxu0 %v496
    %1675 = vmatprep.subr.mxu0 0.0
    %1676 = vmatpush1.msra.mxu0 %v497
    %1677 = vmatprep.subr.mxu0 0.0
    %1678 = vmatpush1.msra.mxu0 0.0
    %1679 = vmatprep.subr.mxu0 0.0
    %1680 = vmatpush1.msra.mxu0 0.0
    %1681 = vmatprep.subr.mxu0 0.0
    %1682 = vmatpush1.msra.mxu0 0.0
    %1683 = vmatprep.subr.mxu0 0.0
    %1684 = vmatpush1.msra.mxu0 0.0
    %1685 = vmatprep.subr.mxu0 0.0
    %1686 = vmatpush1.msra.mxu0 0.0
    %1687 = vmatprep.subr.mxu0 0.0
    %1688 = vmatpush1.msra.mxu0 0.0
    %1689 = vmatprep.subr.mxu0 0.0
    %1690 = vmatpush1.msra.mxu0 0.0
    %1691 = vmatprep.subr.mxu0 0.0
    %1692 = vmatpush1.msra.mxu0 0.0
    %1693 = vmatprep.subr.mxu0 0.0
    %1694 = vmatpush1.msra.mxu0 0.0
    %1695 = vmatprep.subr.mxu0 0.0
    %1696 = vmatpush1.msra.mxu0 0.0
    %1697 = vmatprep.subr.mxu0 0.0
    %1698 = vmatpush1.msra.mxu0 0.0
    %1699 = vmatprep.subr.mxu0 0.0
    %1700 = vmatpush1.msra.mxu0 0.0
    %1701 = vmatprep.subr.mxu0 0.0
    %1702 = vmatpush1.msra.mxu0 0.0
    %1703 = vmatprep.subr.mxu0 0.0
    %1704 = vmatpush1.msra.mxu0 0.0
    %1705 = vmatprep.subr.mxu0 0.0
    %1706 = vmatpush1.msra.mxu0 0.0
    %1707 = vmatprep.subr.mxu0 0.0
    %1708 = vmatpush1.msra.mxu0 0.0
    %1709 = vmatprep.subr.mxu0 0.0
    %1710 = vmatpush1.msra.mxu0 0.0
    %1711 = vmatprep.subr.mxu0 0.0
    %1712 = vmatpush1.msra.mxu0 0.0
    %1713 = vmatprep.subr.mxu0 0.0
    %1714 = vmatpush1.msra.mxu0 0.0
    %1715 = vmatprep.subr.mxu0 0.0
    %1716 = vmatpush1.msra.mxu0 0.0
    %1717 = vmatprep.subr.mxu0 0.0
    %1718 = vmatpush1.msra.mxu0 0.0
    %1719 = vmatprep.subr.mxu0 0.0
    %1720 = vmatpush1.msra.mxu0 0.0
    %1721 = vmatprep.subr.mxu0 0.0
    %1722 = vmatpush1.msra.mxu0 0.0
    %1723 = vmatprep.subr.mxu0 0.0
    %1724 = vmatpush1.msra.mxu0 0.0
    %1725 = vmatprep.subr.mxu0 0.0
    %1726 = vmatpush1.msra.mxu0 0.0
    %1727 = vmatprep.subr.mxu0 0.0
    %1728 = vmatpush1.msra.mxu0 0.0
    %1729 = vmatprep.subr.mxu0 0.0
    %1730 = vmatpush1.msra.mxu0 0.0
    %1731 = vmatprep.subr.mxu0 0.0
    %1732 = vmatpush1.msra.mxu0 0.0
    %1733 = vmatprep.mubr.f32.mxu0 0.0
    %1734 = vmatmul.mubr.f32.gmra.mrb[0].mxu0 %v1667
    %v1735 = vpop.f32.mrb[0].mxu0
    %v1736 = vadd.f32 %v699, %v1735
    %v1737 = vpop.f32.mrb[0].mxu0
    %1738 = vdwg.mxu0
    %v1740 = vsel %vm527, %v1736, 0
    %1742 = vmatprep.subr.mxu0 0.0
    %1743 = vmatpush1.msra.mxu0 %v774
    %1744 = vmatprep.subr.mxu0 0.0
    %1745 = vmatpush1.msra.mxu0 %v776
    %1746 = vmatprep.subr.mxu0 0.0
    %1747 = vmatpush1.msra.mxu0 %v778
    %1748 = vmatprep.subr.mxu0 0.0
    %1749 = vmatpush1.msra.mxu0 %v780
    %1750 = vmatprep.subr.mxu0 0.0
    %1751 = vmatpush1.msra.mxu0 0.0
    %1752 = vmatprep.subr.mxu0 0.0
    %1753 = vmatpush1.msra.mxu0 0.0
    %1754 = vmatprep.subr.mxu0 0.0
    %1755 = vmatpush1.msra.mxu0 0.0
    %1756 = vmatprep.subr.mxu0 0.0
    %1757 = vmatpush1.msra.mxu0 0.0
    %1758 = vmatprep.subr.mxu0 0.0
    %1759 = vmatpush1.msra.mxu0 0.0
    %1760 = vmatprep.subr.mxu0 0.0
    %1761 = vmatpush1.msra.mxu0 0.0
    %1762 = vmatprep.subr.mxu0 0.0
    %1763 = vmatpush1.msra.mxu0 0.0
    %1764 = vmatprep.subr.mxu0 0.0
    %1765 = vmatpush1.msra.mxu0 0.0
    %1766 = vmatprep.subr.mxu0 0.0
    %1767 = vmatpush1.msra.mxu0 0.0
    %1768 = vmatprep.subr.mxu0 0.0
    %1769 = vmatpush1.msra.mxu0 0.0
    %1770 = vmatprep.subr.mxu0 0.0
    %1771 = vmatpush1.msra.mxu0 0.0
    %1772 = vmatprep.subr.mxu0 0.0
    %1773 = vmatpush1.msra.mxu0 0.0
    %1774 = vmatprep.subr.mxu0 0.0
    %1775 = vmatpush1.msra.mxu0 0.0
    %1776 = vmatprep.subr.mxu0 0.0
    %1777 = vmatpush1.msra.mxu0 0.0
    %1778 = vmatprep.subr.mxu0 0.0
    %1779 = vmatpush1.msra.mxu0 0.0
    %1780 = vmatprep.subr.mxu0 0.0
    %1781 = vmatpush1.msra.mxu0 0.0
    %1782 = vmatprep.subr.mxu0 0.0
    %1783 = vmatpush1.msra.mxu0 0.0
    %1784 = vmatprep.subr.mxu0 0.0
    %1785 = vmatpush1.msra.mxu0 0.0
    %1786 = vmatprep.subr.mxu0 0.0
    %1787 = vmatpush1.msra.mxu0 0.0
    %1788 = vmatprep.subr.mxu0 0.0
    %1789 = vmatpush1.msra.mxu0 0.0
    %1790 = vmatprep.subr.mxu0 0.0
    %1791 = vmatpush1.msra.mxu0 0.0
    %1792 = vmatprep.subr.mxu0 0.0
    %1793 = vmatpush1.msra.mxu0 0.0
    %1794 = vmatprep.subr.mxu0 0.0
    %1795 = vmatpush1.msra.mxu0 0.0
    %1796 = vmatprep.subr.mxu0 0.0
    %1797 = vmatpush1.msra.mxu0 0.0
    %1798 = vmatprep.subr.mxu0 0.0
    %1799 = vmatpush1.msra.mxu0 0.0
    %1800 = vmatprep.subr.mxu0 0.0
    %1801 = vmatpush1.msra.mxu0 0.0
    %1802 = vmatprep.subr.mxu0 0.0
    %1803 = vmatpush1.msra.mxu0 0.0
    %1804 = vmatprep.subr.mxu0 0.0
    %1805 = vmatpush1.msra.mxu0 0.0
    %1806 = vmatprep.mubr.f32.mxu0 0.0
    %1807 = vmatmul.mubr.f32.gmra.mrb[0].mxu0 %v1740
    %v1808 = vpop.f32.mrb[0].mxu0
    %v1809 = vadd.f32 0.0, %v1808
    %v1810 = vpop.f32.mrb[0].mxu0
    %1811 = vdwg.mxu0
    %v1813 = vsel %vm237, %v1809, 0
    %1815 = vmatprep.subr.mxu0 0.0
    %1816 = vmatpush1.msra.mxu0 %v1813
    %1817 = vmatprep.subr.mxu0 0.0
    %1818 = vmatpush1.msra.mxu0 0.0
    %1819 = vmatprep.subr.mxu0 0.0
    %1820 = vmatpush1.msra.mxu0 0.0
    %1821 = vmatprep.subr.mxu0 0.0
    %1822 = vmatpush1.msra.mxu0 0.0
    %1823 = vmatprep.subr.mxu0 0.0
    %1824 = vmatpush1.msra.mxu0 0.0
    %1825 = vmatprep.subr.mxu0 0.0
    %1826 = vmatpush1.msra.mxu0 0.0
    %1827 = vmatprep.subr.mxu0 0.0
    %1828 = vmatpush1.msra.mxu0 0.0
    %1829 = vmatprep.subr.mxu0 0.0
    %1830 = vmatpush1.msra.mxu0 0.0
    %1831 = vmatprep.subr.mxu0 0.0
    %1832 = vmatpush1.msra.mxu0 0.0
    %1833 = vmatprep.subr.mxu0 0.0
    %1834 = vmatpush1.msra.mxu0 0.0
    %1835 = vmatprep.subr.mxu0 0.0
    %1836 = vmatpush1.msra.mxu0 0.0
    %1837 = vmatprep.subr.mxu0 0.0
    %1838 = vmatpush1.msra.mxu0 0.0
    %1839 = vmatprep.subr.mxu0 0.0
    %1840 = vmatpush1.msra.mxu0 0.0
    %1841 = vmatprep.subr.mxu0 0.0
    %1842 = vmatpush1.msra.mxu0 0.0
    %1843 = vmatprep.subr.mxu0 0.0
    %1844 = vmatpush1.msra.mxu0 0.0
    %1845 = vmatprep.subr.mxu0 0.0
    %1846 = vmatpush1.msra.mxu0 0.0
    %1847 = vmatprep.subr.mxu0 0.0
    %1848 = vmatpush1.msra.mxu0 0.0
    %1849 = vmatprep.subr.mxu0 0.0
    %1850 = vmatpush1.msra.mxu0 0.0
    %1851 = vmatprep.subr.mxu0 0.0
    %1852 = vmatpush1.msra.mxu0 0.0
    %1853 = vmatprep.subr.mxu0 0.0
    %1854 = vmatpush1.msra.mxu0 0.0
    %1855 = vmatprep.subr.mxu0 0.0
    %1856 = vmatpush1.msra.mxu0 0.0
    %1857 = vmatprep.subr.mxu0 0.0
    %1858 = vmatpush1.msra.mxu0 0.0
    %1859 = vmatprep.subr.mxu0 0.0
    %1860 = vmatpush1.msra.mxu0 0.0
    %1861 = vmatprep.subr.mxu0 0.0
    %1862 = vmatpush1.msra.mxu0 0.0
    %1863 = vmatprep.subr.mxu0 0.0
    %1864 = vmatpush1.msra.mxu0 0.0
    %1865 = vmatprep.subr.mxu0 0.0
    %1866 = vmatpush1.msra.mxu0 0.0
    %1867 = vmatprep.subr.mxu0 0.0
    %1868 = vmatpush1.msra.mxu0 0.0
    %1869 = vmatprep.subr.mxu0 0.0
    %1870 = vmatpush1.msra.mxu0 0.0
    %1871 = vmatprep.subr.mxu0 0.0
    %1872 = vmatpush1.msra.mxu0 0.0
    %1873 = vmatprep.subr.mxu0 0.0
    %1874 = vmatpush1.msra.mxu0 0.0
    %1875 = vmatprep.subr.mxu0 0.0
    %1876 = vmatpush1.msra.mxu0 0.0
    %1877 = vmatprep.subr.mxu0 0.0
    %1878 = vmatpush1.msra.mxu0 0.0
    %1879 = vmatprep.mubr.f32.mxu0 0.0
    %1880 = vmatmul.mubr.f32.gmra.mrb[0].mxu0 %v233
    %v1881 = vpop.f32.mrb[0].mxu0
    %v1882 = vadd.f32 0.0, %v1881
    %v1883 = vpop.f32.mrb[0].mxu0
    %1884 = vmatprep.mubr.f32.mxu0 0.0
    %1885 = vmatmul.mubr.f32.gmra.mrb[0].mxu0 %v235
    %v1886 = vpop.f32.mrb[0].mxu0
    %v1887 = vadd.f32 0.0, %v1886
    %v1888 = vpop.f32.mrb[0].mxu0
    %1889 = vdwg.mxu0
    %v1890 = vadd.f32 %v688, %v1882
    %v1891 = vadd.f32 %v693, %v1887
    %v1892 = vadd.f32 %v1890, %v941
    %v1893 = vadd.f32 %v1891, %v941
    %v1894 = vtanh.pop %v1892
    %v1895 = vtanh.pop %v1893
    %v1896 = vmul.f32 %v1894, 1.442695
    %v1897 = vpow.pop %v1896
    %v1898 = vmul.f32 %v1895, 1.442695
    %v1899 = vpow.pop %v1898
    %1900 = vmatprep.subr.mxu0 0.0
    %1901 = vmatpush1.msra.mxu0 %v1897
    %1902 = vmatprep.subr.mxu0 0.0
    %1903 = vmatpush1.msra.mxu0 %v1899
    %1904 = vmatprep.subr.mxu0 0.0
    %1905 = vmatpush1.msra.mxu0 0.0
    %1906 = vmatprep.subr.mxu0 0.0
    %1907 = vmatpush1.msra.mxu0 0.0
    %1908 = vmatprep.subr.mxu0 0.0
    %1909 = vmatpush1.msra.mxu0 0.0
    %1910 = vmatprep.subr.mxu0 0.0
    %1911 = vmatpush1.msra.mxu0 0.0
    %1912 = vmatprep.subr.mxu0 0.0
    %1913 = vmatpush1.msra.mxu0 0.0
    %1914 = vmatprep.subr.mxu0 0.0
    %1915 = vmatpush1.msra.mxu0 0.0
    %1916 = vmatprep.subr.mxu0 0.0
    %1917 = vmatpush1.msra.mxu0 0.0
    %1918 = vmatprep.subr.mxu0 0.0
    %1919 = vmatpush1.msra.mxu0 0.0
    %1920 = vmatprep.subr.mxu0 0.0
    %1921 = vmatpush1.msra.mxu0 0.0
    %1922 = vmatprep.subr.mxu0 0.0
    %1923 = vmatpush1.msra.mxu0 0.0
    %1924 = vmatprep.subr.mxu0 0.0
    %1925 = vmatpush1.msra.mxu0 0.0
    %1926 = vmatprep.subr.mxu0 0.0
    %1927 = vmatpush1.msra.mxu0 0.0
    %1928 = vmatprep.subr.mxu0 0.0
    %1929 = vmatpush1.msra.mxu0 0.0
    %1930 = vmatprep.subr.mxu0 0.0
    %1931 = vmatpush1.msra.mxu0 0.0
    %1932 = vmatprep.subr.mxu0 0.0
    %1933 = vmatpush1.msra.mxu0 0.0
    %1934 = vmatprep.subr.mxu0 0.0
    %1935 = vmatpush1.msra.mxu0 0.0
    %1936 = vmatprep.subr.mxu0 0.0
    %1937 = vmatpush1.msra.mxu0 0.0
    %1938 = vmatprep.subr.mxu0 0.0
    %1939 = vmatpush1.msra.mxu0 0.0
    %1940 = vmatprep.subr.mxu0 0.0
    %1941 = vmatpush1.msra.mxu0 0.0
    %1942 = vmatprep.subr.mxu0 0.0
    %1943 = vmatpush1.msra.mxu0 0.0
    %1944 = vmatprep.subr.mxu0 0.0
    %1945 = vmatpush1.msra.mxu0 0.0
    %1946 = vmatprep.subr.mxu0 0.0
    %1947 = vmatpush1.msra.mxu0 0.0
    %1948 = vmatprep.subr.mxu0 0.0
    %1949 = vmatpush1.msra.mxu0 0.0
    %1950 = vmatprep.subr.mxu0 0.0
    %1951 = vmatpush1.msra.mxu0 0.0
    %1952 = vmatprep.subr.mxu0 0.0
    %1953 = vmatpush1.msra.mxu0 0.0
    %1954 = vmatprep.subr.mxu0 0.0
    %1955 = vmatpush1.msra.mxu0 0.0
    %1956 = vmatprep.subr.mxu0 0.0
    %1957 = vmatpush1.msra.mxu0 0.0
    %1958 = vmatprep.subr.mxu0 0.0
    %1959 = vmatpush1.msra.mxu0 0.0
    %1960 = vmatprep.subr.mxu0 0.0
    %1961 = vmatpush1.msra.mxu0 0.0
    %1962 = vmatprep.subr.mxu0 0.0
    %1963 = vmatpush1.msra.mxu0 0.0
    %1964 = vmatprep.mubr.f32.mxu0 0.0
    %1965 = vmatmul.mubr.f32.gmra.mrb[0].mxu0 %v154
    %v1966 = vpop.f32.mrb[0].mxu0
    %v1967 = vadd.f32 0.0, %v1966
    %v1968 = vpop.f32.mrb[0].mxu0
    %1969 = vdwg.mxu0
    %1971 = vset.pattern.permute.xlu0 0
    %1972 = vperm.xlu0 %1971, %v1897
    %v1973 = vpop.permute.xlu0 %1972
    %1976 = vset.pattern.permute.xlu0 0
    %1977 = vperm.xlu0 %1976, %v1899
    %v1978 = vpop.permute.xlu0 %1977
    %v1980 = vmul.f32 %v1973, %v601
    %v1981 = vmul.f32 %v1978, %v606
    %1982 = vmatprep.subr.mxu0 0.0
    %1983 = vmatpush1.msra.mxu0 %v1980
    %1984 = vmatprep.subr.mxu0 0.0
    %1985 = vmatpush1.msra.mxu0 %v1981
    %1986 = vmatprep.subr.mxu0 0.0
    %1987 = vmatpush1.msra.mxu0 0.0
    %1988 = vmatprep.subr.mxu0 0.0
    %1989 = vmatpush1.msra.mxu0 0.0
    %1990 = vmatprep.subr.mxu0 0.0
    %1991 = vmatpush1.msra.mxu0 0.0
    %1992 = vmatprep.subr.mxu0 0.0
    %1993 = vmatpush1.msra.mxu0 0.0
    %1994 = vmatprep.subr.mxu0 0.0
    %1995 = vmatpush1.msra.mxu0 0.0
    %1996 = vmatprep.subr.mxu0 0.0
    %1997 = vmatpush1.msra.mxu0 0.0
    %1998 = vmatprep.subr.mxu0 0.0
    %1999 = vmatpush1.msra.mxu0 0.0
    %2000 = vmatprep.subr.mxu0 0.0
    %2001 = vmatpush1.msra.mxu0 0.0
    %2002 = vmatprep.subr.mxu0 0.0
    %2003 = vmatpush1.msra.mxu0 0.0
    %2004 = vmatprep.subr.mxu0 0.0
    %2005 = vmatpush1.msra.mxu0 0.0
    %2006 = vmatprep.subr.mxu0 0.0
    %2007 = vmatpush1.msra.mxu0 0.0
    %2008 = vmatprep.subr.mxu0 0.0
    %2009 = vmatpush1.msra.mxu0 0.0
    %2010 = vmatprep.subr.mxu0 0.0
    %2011 = vmatpush1.msra.mxu0 0.0
    %2012 = vmatprep.subr.mxu0 0.0
    %2013 = vmatpush1.msra.mxu0 0.0
    %2014 = vmatprep.subr.mxu0 0.0
    %2015 = vmatpush1.msra.mxu0 0.0
    %2016 = vmatprep.subr.mxu0 0.0
    %2017 = vmatpush1.msra.mxu0 0.0
    %2018 = vmatprep.subr.mxu0 0.0
    %2019 = vmatpush1.msra.mxu0 0.0
    %2020 = vmatprep.subr.mxu0 0.0
    %2021 = vmatpush1.msra.mxu0 0.0
    %2022 = vmatprep.subr.mxu0 0.0
    %2023 = vmatpush1.msra.mxu0 0.0
    %2024 = vmatprep.subr.mxu0 0.0
    %2025 = vmatpush1.msra.mxu0 0.0
    %2026 = vmatprep.subr.mxu0 0.0
    %2027 = vmatpush1.msra.mxu0 0.0
    %2028 = vmatprep.subr.mxu0 0.0
    %2029 = vmatpush1.msra.mxu0 0.0
    %2030 = vmatprep.subr.mxu0 0.0
    %2031 = vmatpush1.msra.mxu0 0.0
    %2032 = vmatprep.subr.mxu0 0.0
    %2033 = vmatpush1.msra.mxu0 0.0
    %2034 = vmatprep.subr.mxu0 0.0
    %2035 = vmatpush1.msra.mxu0 0.0
    %2036 = vmatprep.subr.mxu0 0.0
    %2037 = vmatpush1.msra.mxu0 0.0
    %2038 = vmatprep.subr.mxu0 0.0
    %2039 = vmatpush1.msra.mxu0 0.0
    %2040 = vmatprep.subr.mxu0 0.0
    %2041 = vmatpush1.msra.mxu0 0.0
    %2042 = vmatprep.subr.mxu0 0.0
    %2043 = vmatpush1.msra.mxu0 0.0
    %2044 = vmatprep.subr.mxu0 0.0
    %2045 = vmatpush1.msra.mxu0 0.0
    %2046 = vmatprep.mubr.f32.mxu0 0.0
    %2047 = vmatmul.mubr.f32.gmra.mrb[0].mxu0 %v154
    %v2048 = vpop.f32.mrb[0].mxu0
    %v2049 = vadd.f32 0.0, %v2048
    %v2050 = vpop.f32.mrb[0].mxu0
    %2051 = vdwg.mxu0
    %v2052 = vrcp.pop %v1967
    %2054 = vset.pattern.permute.xlu0 0
    %2055 = vperm.xlu0 %2054, %v2052
    %v2056 = vpop.permute.xlu0 %2055
    %v2058 = vmul.f32 %v2049, %v2056
    %v2060 = vsel %vm527, %v2058, 0
    %2062 = vmatprep.subr.mxu0 0.0
    %2063 = vmatpush1.msra.mxu0 %v1114
    %2064 = vmatprep.subr.mxu0 0.0
    %2065 = vmatpush1.msra.mxu0 %v1116
    %2066 = vmatprep.subr.mxu0 0.0
    %2067 = vmatpush1.msra.mxu0 %v1118
    %2068 = vmatprep.subr.mxu0 0.0
    %2069 = vmatpush1.msra.mxu0 %v1120
    %2070 = vmatprep.subr.mxu0 0.0
    %2071 = vmatpush1.msra.mxu0 0.0
    %2072 = vmatprep.subr.mxu0 0.0
    %2073 = vmatpush1.msra.mxu0 0.0
    %2074 = vmatprep.subr.mxu0 0.0
    %2075 = vmatpush1.msra.mxu0 0.0
    %2076 = vmatprep.subr.mxu0 0.0
    %2077 = vmatpush1.msra.mxu0 0.0
    %2078 = vmatprep.subr.mxu0 0.0
    %2079 = vmatpush1.msra.mxu0 0.0
    %2080 = vmatprep.subr.mxu0 0.0
    %2081 = vmatpush1.msra.mxu0 0.0
    %2082 = vmatprep.subr.mxu0 0.0
    %2083 = vmatpush1.msra.mxu0 0.0
    %2084 = vmatprep.subr.mxu0 0.0
    %2085 = vmatpush1.msra.mxu0 0.0
    %2086 = vmatprep.subr.mxu0 0.0
    %2087 = vmatpush1.msra.mxu0 0.0
    %2088 = vmatprep.subr.mxu0 0.0
    %2089 = vmatpush1.msra.mxu0 0.0
    %2090 = vmatprep.subr.mxu0 0.0
    %2091 = vmatpush1.msra.mxu0 0.0
    %2092 = vmatprep.subr.mxu0 0.0
    %2093 = vmatpush1.msra.mxu0 0.0
    %2094 = vmatprep.subr.mxu0 0.0
    %2095 = vmatpush1.msra.mxu0 0.0
    %2096 = vmatprep.subr.mxu0 0.0
    %2097 = vmatpush1.msra.mxu0 0.0
    %2098 = vmatprep.subr.mxu0 0.0
    %2099 = vmatpush1.msra.mxu0 0.0
    %2100 = vmatprep.subr.mxu0 0.0
    %2101 = vmatpush1.msra.mxu0 0.0
    %2102 = vmatprep.subr.mxu0 0.0
    %2103 = vmatpush1.msra.mxu0 0.0
    %2104 = vmatprep.subr.mxu0 0.0
    %2105 = vmatpush1.msra.mxu0 0.0
    %2106 = vmatprep.subr.mxu0 0.0
    %2107 = vmatpush1.msra.mxu0 0.0
    %2108 = vmatprep.subr.mxu0 0.0
    %2109 = vmatpush1.msra.mxu0 0.0
    %2110 = vmatprep.subr.mxu0 0.0
    %2111 = vmatpush1.msra.mxu0 0.0
    %2112 = vmatprep.subr.mxu0 0.0
    %2113 = vmatpush1.msra.mxu0 0.0
    %2114 = vmatprep.subr.mxu0 0.0
    %2115 = vmatpush1.msra.mxu0 0.0
    %2116 = vmatprep.subr.mxu0 0.0
    %2117 = vmatpush1.msra.mxu0 0.0
    %2118 = vmatprep.subr.mxu0 0.0
    %2119 = vmatpush1.msra.mxu0 0.0
    %2120 = vmatprep.subr.mxu0 0.0
    %2121 = vmatpush1.msra.mxu0 0.0
    %2122 = vmatprep.subr.mxu0 0.0
    %2123 = vmatpush1.msra.mxu0 0.0
    %2124 = vmatprep.subr.mxu0 0.0
    %2125 = vmatpush1.msra.mxu0 0.0
    %2126 = vmatprep.mubr.f32.mxu0 0.0
    %2127 = vmatmul.mubr.f32.gmra.mrb[0].mxu0 %v2060
    %v2128 = vpop.f32.mrb[0].mxu0
    %v2129 = vadd.f32 %v1112, %v2128
    %v2130 = vpop.f32.mrb[0].mxu0
    %2131 = vdwg.mxu0
    %v2132 = vadd.f32 %v2129, %v1736
    %v2133 = vlaneseq
    %v2134 = vshrl.u32 %v2133, 7
    %v2135 = vsub.s32 0, %v2134
    %v2136 = vrot.slane %v505, %v2135
    %v2138 = vsel %vm527, %v2132, 0
    %2140 = vmatprep.subr.mxu0 0.0
    %2141 = vmatpush1.msra.mxu0 %v498
    %2142 = vmatprep.subr.mxu0 0.0
    %2143 = vmatpush1.msra.mxu0 %v499
    %2144 = vmatprep.subr.mxu0 0.0
    %2145 = vmatpush1.msra.mxu0 %v500
    %2146 = vmatprep.subr.mxu0 0.0
    %2147 = vmatpush1.msra.mxu0 %v501
    %2148 = vmatprep.subr.mxu0 0.0
    %2149 = vmatpush1.msra.mxu0 0.0
    %2150 = vmatprep.subr.mxu0 0.0
    %2151 = vmatpush1.msra.mxu0 0.0
    %2152 = vmatprep.subr.mxu0 0.0
    %2153 = vmatpush1.msra.mxu0 0.0
    %2154 = vmatprep.subr.mxu0 0.0
    %2155 = vmatpush1.msra.mxu0 0.0
    %2156 = vmatprep.subr.mxu0 0.0
    %2157 = vmatpush1.msra.mxu0 0.0
    %2158 = vmatprep.subr.mxu0 0.0
    %2159 = vmatpush1.msra.mxu0 0.0
    %2160 = vmatprep.subr.mxu0 0.0
    %2161 = vmatpush1.msra.mxu0 0.0
    %2162 = vmatprep.subr.mxu0 0.0
    %2163 = vmatpush1.msra.mxu0 0.0
    %2164 = vmatprep.subr.mxu0 0.0
    %2165 = vmatpush1.msra.mxu0 0.0
    %2166 = vmatprep.subr.mxu0 0.0
    %2167 = vmatpush1.msra.mxu0 0.0
    %2168 = vmatprep.subr.mxu0 0.0
    %2169 = vmatpush1.msra.mxu0 0.0
    %2170 = vmatprep.subr.mxu0 0.0
    %2171 = vmatpush1.msra.mxu0 0.0
    %2172 = vmatprep.subr.mxu0 0.0
    %2173 = vmatpush1.msra.mxu0 0.0
    %2174 = vmatprep.subr.mxu0 0.0
    %2175 = vmatpush1.msra.mxu0 0.0
    %2176 = vmatprep.subr.mxu0 0.0
    %2177 = vmatpush1.msra.mxu0 0.0
    %2178 = vmatprep.subr.mxu0 0.0
    %2179 = vmatpush1.msra.mxu0 0.0
    %2180 = vmatprep.subr.mxu0 0.0
    %2181 = vmatpush1.msra.mxu0 0.0
    %2182 = vmatprep.subr.mxu0 0.0
    %2183 = vmatpush1.msra.mxu0 0.0
    %2184 = vmatprep.subr.mxu0 0.0
    %2185 = vmatpush1.msra.mxu0 0.0
    %2186 = vmatprep.subr.mxu0 0.0
    %2187 = vmatpush1.msra.mxu0 0.0
    %2188 = vmatprep.subr.mxu0 0.0
    %2189 = vmatpush1.msra.mxu0 0.0
    %2190 = vmatprep.subr.mxu0 0.0
    %2191 = vmatpush1.msra.mxu0 0.0
    %2192 = vmatprep.subr.mxu0 0.0
    %2193 = vmatpush1.msra.mxu0 0.0
    %2194 = vmatprep.subr.mxu0 0.0
    %2195 = vmatpush1.msra.mxu0 0.0
    %2196 = vmatprep.subr.mxu0 0.0
    %2197 = vmatpush1.msra.mxu0 0.0
    %2198 = vmatprep.subr.mxu0 0.0
    %2199 = vmatpush1.msra.mxu0 0.0
    %2200 = vmatprep.subr.mxu0 0.0
    %2201 = vmatpush1.msra.mxu0 0.0
    %2202 = vmatprep.subr.mxu0 0.0
    %2203 = vmatpush1.msra.mxu0 0.0
    %2204 = vmatprep.mubr.f32.mxu0 0.0
    %2205 = vmatmul.mubr.f32.gmra.mrb[0].mxu0 %v2138
    %v2206 = vpop.f32.mrb[0].mxu0
    %v2207 = vadd.f32 %v2136, %v2206
    %v2208 = vpop.f32.mrb[0].mxu0
    %2209 = vdwg.mxu0
    %2210 = vst [vmem:[#allocation2] sm:$0x3] %v2207
    // Predicated region
    $region22: #{memnet_pallas.1} parent=1 // pred_check
      _
    $region23: #{memnet_pallas.1} parent=1 // pred_check_branch
      %2212 = sbr.rel (0) target = $region25
    $region24: #{memnet_pallas.1} parent=1 // pred_region
      %s2214 = ssub.s32 32, 32
      %2215 = vsyncadd [#allocation3], %s2214
      %s2217 = sshll.u32 [#allocation2], 4
      %s2218 = int_to_ptr.vmem [resolvable:$true] %s2217
      %2220 = dma.vmem_to_hbm [thread:$0]  %s2218, 32, %s5, [#allocation3]
    $region25: #{memnet_pallas.1} parent=1 // pred_fallthru
      _
    // Predicated region
    $region26: #{memnet_pallas.1} parent=1 // pred_check
      _
    $region27: #{memnet_pallas.1} parent=1 // pred_check_branch
      %2222 = sbr.rel (0) target = $region29
    $region28: #{memnet_pallas.1} parent=1 // pred_region
      %2223 = dma.done [#allocation3], 32
    $region29: #{memnet_pallas.1} parent=1 // pred_fallthru
      _
    %2224 = vsyncpa [#allocation3], 1

</llo_original>
